<compile_context>
chip_gen: v5e
topology: v5e:2x2
jax: 0.10.0
libtpu: 0.0.40
codegen_flags: <defaults>
</compile_context>

<pallas_src>
import jax
import jax.numpy as jnp
from jax.experimental import pallas as pl
from jax.experimental.pallas import tpu as pltpu


# --------------------------------------------------------------------------
# Kernels
# --------------------------------------------------------------------------
def sgc_prop_kernel(a_ref, h_ref, o_ref):
    """One propagation hop for a row block: o = A_block @ h   (f32 acc)."""
    acc = jnp.dot(a_ref[...], h_ref[...],
                  preferred_element_type=jnp.float32)          # [tm, Cp] f32
    o_ref[...] = acc.astype(o_ref.dtype)                       # store bf16


def sgc_prop_logsoftmax_kernel(a_ref, h_ref, b_ref, o_ref):
    """Final hop for a row block: log_softmax(A_block @ h + b)  (f32 epilogue).

    Padded class lanes carry bias = -1e30 (and zero columns of h), so they
    contribute exp(-huge) == 0 to the normalization and are sliced off by the
    wrapper.  This relies on the epilogue staying f32.
    """
    logits = jnp.dot(a_ref[...], h_ref[...],
                     preferred_element_type=jnp.float32)        # [tm, Cp] f32
    logits = logits + b_ref[...]                                # broadcast [1,Cp]
    m = jnp.max(logits, axis=1, keepdims=True)
    z = logits - m
    lse = jnp.log(jnp.sum(jnp.exp(z), axis=1, keepdims=True))
    o_ref[...] = (z - lse).astype(o_ref.dtype)


# --------------------------------------------------------------------------
# Wrapper
# --------------------------------------------------------------------------
def _round_up(v, m):
    return ((v + m - 1) // m) * m


def _vmem_capacity_bytes():
    """Physical VMEM per TensorCore; conservative 64 MiB fallback."""
    try:
        info = pltpu.get_tpu_info()
        cap = getattr(info, "vmem_capacity_bytes", None)
        if cap:
            return int(cap)
    except Exception:
        pass
    return 64 << 20


def sgc_forward(a_hat, x, w, b):
    n, d = x.shape
    c = w.shape[1]
    cp = _round_up(c, 128)                     # lane-dense class width (=128)

    # ---- generation-aware tiling -------------------------------------------
    vmem_cap = _vmem_capacity_bytes()
    small_vmem = vmem_cap <= (64 << 20)        # v7x (or unknown): be frugal
    tm = 256 if small_vmem else 512            # A row-block height
    cap = (56 << 20) if small_vmem else (112 << 20)

    np0 = _round_up(n, 128)

    def _budget(tm_, np_):
        # 2x A block (double buffer) + 2x resident h + 2x out block + bias
        # + generous headroom for compiler scratch / epilogue temps.
        return (2 * tm_ * np_ * 2 + 2 * np_ * cp * 2
                + 2 * tm_ * cp * 4 + cp * 4 + (4 << 20))

    while tm > 128 and _budget(tm, _round_up(np0, tm)) > cap:
        tm //= 2                               # 512 -> 256 -> 128 (all %128==0)
    if np0 <= tm:
        tm = np0                               # tiny graph: single block
    n_pad = _round_up(np0, tm)
    grid_rows = n_pad // tm

    vmem_limit = int(min(max(_budget(tm, n_pad), 32 << 20), cap))

    # ---- pad + cast operands -----------------------------------------------
    a_bf = jnp.zeros((n_pad, n_pad), jnp.bfloat16).at[:n, :n].set(
        a_hat.astype(jnp.bfloat16))
    w_pad = jnp.zeros((d, cp), jnp.float32).at[:, :c].set(w.astype(jnp.float32))
    # Padded class lanes get -1e30 bias => vanish from the f32 softmax.
    b_pad = jnp.full((1, cp), -1e30, jnp.float32).at[0, :c].set(
        b.astype(jnp.float32))

    # Hoisted projection h0 = x @ W (done once as a plain XLA GEMM; K=D is far
    # too small to be worth dragging through the tiled kernel).
    h0 = jnp.zeros((n_pad, cp), jnp.float32).at[:n].set(
        x.astype(jnp.float32) @ w_pad)
    h0_bf = h0.astype(jnp.bfloat16)

    # ---- specs shared by both hops -----------------------------------------
    a_spec = pl.BlockSpec((tm, n_pad), lambda i: (i, 0))     # streamed rows
    h_spec = pl.BlockSpec((n_pad, cp), lambda i: (0, 0))     # resident
    b_spec = pl.BlockSpec((1, cp), lambda i: (0, 0))         # resident
    o_spec = pl.BlockSpec((tm, cp), lambda i: (i, 0))

    cparams = pltpu.CompilerParams(
        dimension_semantics=("parallel",),
        vmem_limit_bytes=vmem_limit,
    )

    # ---- hop 1: h1 = A_hat @ h0  (bf16 inter-hop storage) -------------------
    h1_bf = pl.pallas_call(
        sgc_prop_kernel,
        out_shape=jax.ShapeDtypeStruct((n_pad, cp), jnp.bfloat16),
        grid=(grid_rows,),
        in_specs=[a_spec, h_spec],
        out_specs=o_spec,
        compiler_params=cparams,
    )(a_bf, h0_bf)

    # ---- hop 2 + bias + log-softmax epilogue -------------------------------
    out_pad = pl.pallas_call(
        sgc_prop_logsoftmax_kernel,
        out_shape=jax.ShapeDtypeStruct((n_pad, cp), jnp.float32),
        grid=(grid_rows,),
        in_specs=[a_spec, h_spec, b_spec],
        out_specs=o_spec,
        compiler_params=cparams,
    )(a_bf, h1_bf, b_pad)

    return out_pad[:n, :c]


# --------------------------------------------------------------------------
# Glue: dense normalized adjacency  D^{-1/2} (A + I) D^{-1/2}   (plain JAX)
# --------------------------------------------------------------------------
def build_normalized_adjacency(edge_index, num_nodes):
    src, dst = edge_index[0], edge_index[1]
    adj = jnp.zeros((num_nodes, num_nodes), jnp.float32)
    adj = adj.at[src, dst].set(1.0)
    adj = adj.at[dst, src].set(1.0)                       # symmetrize
    # Self-loops: diagonal stays exactly 1 even if edge_index already contains
    # explicit self-loops (matches PyG add_remaining_self_loops behavior).
    adj = jnp.maximum(adj, jnp.eye(num_nodes, dtype=jnp.float32))
    deg = jnp.sum(adj, axis=1)
    d_inv_sqrt = jax.lax.rsqrt(jnp.maximum(deg, 1.0))
    return adj * d_inv_sqrt[:, None] * d_inv_sqrt[None, :]


# --------------------------------------------------------------------------
if __name__ == "__main__":
    key = jax.random.PRNGKey(0)
    num_nodes = 1024          # multiple of 128 -> no row padding waste
    num_dim = 32
    num_class = 8
    num_edges = 4096

    k_x, k_e, k_w, k_b = jax.random.split(key, 4)

    x = jax.random.normal(k_x, (num_nodes, num_dim), dtype=jnp.float32)
    edge_index = jax.random.randint(k_e, (2, num_edges), 0, num_nodes,
                                    dtype=jnp.int32)
    w = (jax.random.normal(k_w, (num_dim, num_class), dtype=jnp.float32)
         / jnp.sqrt(jnp.float32(num_dim)))
    b = jax.random.normal(k_b, (num_class,), dtype=jnp.float32) * 0.01

    a_hat = build_normalized_adjacency(edge_index, num_nodes)

    out = sgc_forward(a_hat, x, w, b)
    out = jax.block_until_ready(out)
    assert out.shape == (num_nodes, num_class)

    # Sanity 1: log-softmax rows sum (in prob space) to ~1.
    probs_sum = jnp.sum(jnp.exp(out), axis=1)
    assert bool(jnp.all(jnp.abs(probs_sum - 1.0) < 1e-3))

    # Sanity 2: agrees with a pure-JAX f32 reference (loose tolerance for the
    # bf16 MXU-input path).
    ref_logits = a_hat @ (a_hat @ x) @ w + b[None, :]
    ref = jax.nn.log_softmax(ref_logits, axis=1)
    max_err = float(jnp.max(jnp.abs(out - ref)))
    assert max_err < 0.1, f"max abs err vs f32 reference: {max_err}"

    print("KERNEL_OK")
</pallas_src>

<mosaic_0001>
module attributes {stable_mosaic.version = 11 : i64} {
  func.func @sgc_prop_kernel(%arg0: i32, %arg1: memref<256x1024xbf16, #tpu.memory_space<vmem>>, %arg2: memref<1024x128xbf16, #tpu.memory_space<vmem>>, %arg3: memref<256x128xbf16, #tpu.memory_space<vmem>>) attributes {dimension_semantics = [#tpu.dimension_semantics<parallel>], iteration_bounds = array<i64: 4>, scalar_prefetch = 0 : i64, scratch_operands = 0 : i64, tpu.core_type = #tpu.core_type<tc>, window_params = [{transform_indices = @transform_0, window_bounds = array<i64: 256, 1024>}, {pipeline_mode = #tpu.pipeline_mode<synchronous>, transform_indices = @transform_1, window_bounds = array<i64: 1024, 128>}, {transform_indices = @transform_2, window_bounds = array<i64: 256, 128>}]} {
    %c0 = arith.constant 0 : index
    %c0_0 = arith.constant 0 : index
    %0 = vector.load %arg1[%c0, %c0_0] : memref<256x1024xbf16, #tpu.memory_space<vmem>>, vector<256x1024xbf16>
    %c0_1 = arith.constant 0 : index
    %c0_2 = arith.constant 0 : index
    %1 = vector.load %arg2[%c0_1, %c0_2] : memref<1024x128xbf16, #tpu.memory_space<vmem>>, vector<1024x128xbf16>
    %cst = arith.constant dense<0.000000e+00> : vector<256x128xf32>
    %2 = tpu.matmul %0, %1, %cst {dimension_numbers = #tpu.dot_dimension_numbers<[1], [0], [0], [1], [0, 0, 1, 1], [], []>} : vector<256x1024xbf16>, vector<1024x128xbf16>, vector<256x128xf32> -> vector<256x128xf32>
    %3 = arith.truncf %2 : vector<256x128xf32> to vector<256x128xbf16>
    %c0_3 = arith.constant 0 : index
    %c0_4 = arith.constant 0 : index
    %4 = vector.load %arg3[%c0_3, %c0_4] : memref<256x128xbf16, #tpu.memory_space<vmem>>, vector<256x128xbf16>
    tpu.vector_store %arg3[%c0_3, %c0_4], %3 {strides = array<i32>} : memref<256x128xbf16, #tpu.memory_space<vmem>>, vector<256x128xbf16>,
    return
  }
  func.func @transform_0(%arg0: i32) -> (i32, i32) {
    %c0_i32 = arith.constant 0 : i32
    %c0_i32_0 = arith.constant 0 : i32
    return %arg0, %c0_i32 : i32, i32
  }
  func.func @transform_1(%arg0: i32) -> (i32, i32) {
    %c0_i32 = arith.constant 0 : i32
    %c0_i32_0 = arith.constant 0 : i32
    %c0_i32_1 = arith.constant 0 : i32
    return %c0_i32, %c0_i32_0 : i32, i32
  }
  func.func @transform_2(%arg0: i32) -> (i32, i32) {
    %c0_i32 = arith.constant 0 : i32
    %c0_i32_0 = arith.constant 0 : i32
    return %arg0, %c0_i32 : i32, i32
  }
}

</mosaic_0001>

<llo_original>
// kernel: tpu_custom_call.1
$region0: #{tpu_custom_call.1}
  #allocation0 [shape = 'u32[]', space=smem, size = 0x4, offset = 0x4, fixed_abs, tag = 'smem constant byte address 0x4 - core index']
  #allocation1 [shape = 'u32[72,128]{1,0:T(1,128)}', space=vmem, size = 0x9000, scoped, tag = 'internal scratch']
  %s0 = inlined_call_operand.hbm [shape: bf16[1024,1024], index: 0, kind: input, shape index: {}]
  %s1 = inlined_call_operand.hbm [shape: bf16[1024,128], index: 1, kind: input, shape index: {}]
  %s2 = inlined_call_operand.hbm [shape: bf16[1024,128], index: 2, kind: output, shape index: {}]
  %s3 = sld [smem:[#allocation0]]
  $region49: #{tpu_custom_call.1} parent=0
    _
  %s5 = ssub.s32 1, %s3
  %s6 = scalar_select 0, %s5, %s3
  $region1: #{tpu_custom_call.1} parent=0
    #allocation2 [shape = 'u8[1048576]{0}', space=vmem, size = 0x100000, scoped, tag = 'input window, operand 0']
    #allocation3 [shape = 's32[2]{0}', space=sflag, size = 0x8, scoped, tag = 'scoped memory for tpu_custom_call.1']
    #allocation4 [shape = 's32[2]{0}', space=sflag, size = 0x8, scoped, tag = 'scoped memory for tpu_custom_call.1']
    #allocation5 [shape = 'u8[262144]{0}', space=vmem, size = 0x40000, scoped, tag = 'input window, operand 1, single buffered']
    #allocation6 [shape = 's32[1]{0}', space=sflag, size = 0x4, scoped, tag = 'scoped memory for tpu_custom_call.1']
    #allocation7 [shape = 'u8[131072]{0}', space=vmem, size = 0x20000, scoped, tag = 'output window, operand 0']
    %7 = vsyncpa [#allocation3], 0
    %s8 = scalar_lea.sflag [#allocation3], 1
    %9 = vsyncpa %s8, 0
    %10 = vsyncpa [#allocation6], 0
    %11 = vsyncpa [#allocation4], 0
    %s12 = scalar_lea.sflag [#allocation4], 1
    %13 = vsyncpa %s12, 0
    loop: start=0, step=1, limit=6
    $region2: #{tpu_custom_call.1} parent=1 // loop_pre_header
      _
    $region3: #{tpu_custom_call.1} parent=1 // loop_header
      %s15 = sphi 0, %s19
      %p16 = scmp.ge.s32.totalorder %s15, 6
      %s25 = sphi 0, %s27
      %s28 = sphi 0, %s25
      %s29 = sphi 0, %s28
      %s45 = sphi 0, %s29
      %s49 = sphi 0, %s49
      %s51 = sphi 0, %s49
      %s52 = sphi 0, %s51
      %s66 = sphi 0, %s52
      %s72 = sphi 0, %s74
      %s75 = sphi 0, %s72
      %s76 = sphi 0, %s75
      %s92 = sphi 0, %s76
    $region4: #{tpu_custom_call.1} parent=1 // loop_header_branch
      %18 = sbr.rel (%p16) target = $region8
    $region5: #{tpu_custom_call.1} parent=1 // loop_body
      %s20 = ssub.s32 %s15, 1
      %s21 = ssub.s32 %s15, 2
      %s22 = sadd.s32 %s15, 1
      %s23 = ssub.s32 %s15, %s22
      %p24 = scmp.eq.s32.totalorder %s23, 0
      %s26 = sadd.s32 %s25, 1
      %s27 = scalar_select %p24, %s25, %s26
      %p30 = pneg %p24
      %p31 = scmp.eq.s32.totalorder %s15, 3
      %p32 = por %p30, %p31
      %p33 = scmp.ne.s32.totalorder %s25, %s28
      %p34 = scmp.eq.s32.totalorder %s15, 0
      %p35 = por %p33, %p34
      %p36 = scmp.ne.s32.totalorder %s25, %s28
      %p37 = scmp.eq.s32.totalorder %s20, 3
      %p38 = por %p36, %p37
      %p39 = scmp.ne.s32.totalorder %s28, %s29
      %p40 = scmp.eq.s32.totalorder %s20, 0
      %p41 = por %p39, %p40
      %p42 = scmp.ne.s32.totalorder %s28, %s29
      %p43 = scmp.eq.s32.totalorder %s21, 3
      %p44 = por %p42, %p43
      %p46 = scmp.ne.s32.totalorder %s29, %s45
      %p47 = scmp.eq.s32.totalorder %s21, 0
      %p48 = por %p46, %p47
      %s50 = sadd.s32 %s49, 1
      %p53 = scmp.eq.s32.totalorder %s15, 3
      %p54 = scmp.ne.s32.totalorder %s49, %s51
      %p55 = scmp.eq.s32.totalorder %s15, 0
      %p56 = por %p54, %p55
      %p57 = scmp.ne.s32.totalorder %s49, %s51
      %p58 = scmp.eq.s32.totalorder %s20, 3
      %p59 = por %p57, %p58
      %p60 = scmp.ne.s32.totalorder %s51, %s52
      %p61 = scmp.eq.s32.totalorder %s20, 0
      %p62 = por %p60, %p61
      %p63 = scmp.ne.s32.totalorder %s51, %s52
      %p64 = scmp.eq.s32.totalorder %s21, 3
      %p65 = por %p63, %p64
      %p67 = scmp.ne.s32.totalorder %s52, %s66
      %p68 = scmp.eq.s32.totalorder %s21, 0
      %p69 = por %p67, %p68
      %s70 = ssub.s32 %s15, %s22
      %p71 = scmp.eq.s32.totalorder %s70, 0
      %s73 = sadd.s32 %s72, 1
      %s74 = scalar_select %p71, %s72, %s73
      %p77 = pneg %p71
      %p78 = scmp.eq.s32.totalorder %s15, 3
      %p79 = por %p77, %p78
      %p80 = scmp.ne.s32.totalorder %s72, %s75
      %p81 = scmp.eq.s32.totalorder %s15, 0
      %p82 = por %p80, %p81
      %p83 = scmp.ne.s32.totalorder %s72, %s75
      %p84 = scmp.eq.s32.totalorder %s20, 3
      %p85 = por %p83, %p84
      %p86 = scmp.ne.s32.totalorder %s75, %s76
      %p87 = scmp.eq.s32.totalorder %s20, 0
      %p88 = por %p86, %p87
      %p89 = scmp.ne.s32.totalorder %s75, %s76
      %p90 = scmp.eq.s32.totalorder %s21, 3
      %p91 = por %p89, %p90
      %p93 = scmp.ne.s32.totalorder %s76, %s92
      %p94 = scmp.eq.s32.totalorder %s21, 0
      %p95 = por %p93, %p94
      %p96 = scmp.le.s32.totalorder 1, %s15
      %p97 = scmp.lt.s32.totalorder %s15, 5
      %p98 = pnand %p96, %p97
      %p99 = pneg %p98
      // Predicated region
      $region9: #{tpu_custom_call.1} parent=5 // pred_check
        _
      $region10: #{tpu_custom_call.1} parent=5 // pred_check_branch
        %101 = sbr.rel (%p98) target = $region12
      $region11: #{tpu_custom_call.1} parent=5 // pred_region
        %s102 = ssub.s32 %s15, 1
        // Predicated region
        $region13: #{tpu_custom_call.1} parent=11 // pred_check
          %p103 = pneg %p62
        $region14: #{tpu_custom_call.1} parent=11 // pred_check_branch
          %105 = sbr.rel (%p103) target = $region16
        $region15: #{tpu_custom_call.1} parent=11 // pred_region
          %107 = vsyncadd [#allocation6], 0
          %s108 = sshll.u32 %s1, 4
          %s109 = int_to_ptr.hbm [resolvable:$true] %s108
          %s110 = sshll.u32 [#allocation5], 4
          %s111 = int_to_ptr.vmem [resolvable:$true] %s110
          %116 = dma.hbm_to_vmem [thread:$0]  %s109, 8192, %s111, [#allocation6], 64, 64, 4
        $region16: #{tpu_custom_call.1} parent=11 // pred_fallthru
          _
      $region12: #{tpu_custom_call.1} parent=5 // pred_fallthru
        _
      %p117 = scmp.lt.s32.totalorder %s15, 4
      // Predicated region
      $region17: #{tpu_custom_call.1} parent=5 // pred_check
        %p118 = pneg %p117
      $region18: #{tpu_custom_call.1} parent=5 // pred_check_branch
        %120 = sbr.rel (%p118) target = $region20
      $region19: #{tpu_custom_call.1} parent=5 // pred_region
        // Predicated region
        $region21: #{tpu_custom_call.1} parent=19 // pred_check
          %p121 = pneg %p35
        $region22: #{tpu_custom_call.1} parent=19 // pred_check_branch
          %123 = sbr.rel (%p121) target = $region24
        $region23: #{tpu_custom_call.1} parent=19 // pred_region
          %s124 = sand.u32 %s25, 1
          %s125 = scalar_lea.sflag [#allocation3], %s124
          %s126 = sand.u32 %s25, 1
          %s127 = smul.addr %s126, 1024
          %s128 = scalar_lea.vmem [#allocation2], %s127
          %s129 = smul.u32 32, %s15
          %131 = vsyncadd %s125, 0
          %s132 = smul.addr %s129, 8
          %s133 = smul.addr %s132, 4
          %s134 = scalar_lea.hbm %s0, %s133
          %s135 = sshll.u32 %s134, 4
          %s136 = int_to_ptr.hbm [resolvable:$true] %s135
          %s137 = sshll.u32 %s128, 4
          %s138 = int_to_ptr.vmem [resolvable:$true] %s137
          %143 = dma.hbm_to_vmem [thread:$0]  %s136, 16384, %s138, %s125, 512, 512, 32
        $region24: #{tpu_custom_call.1} parent=19 // pred_fallthru
          _
      $region20: #{tpu_custom_call.1} parent=5 // pred_fallthru
        _
      %p144 = scmp.le.s32.totalorder 1, %s15
      %p145 = scmp.lt.s32.totalorder %s15, 5
      %p146 = pnand %p144, %p145
      %p147 = pneg %p146
      // Predicated region
      $region25: #{tpu_custom_call.1} parent=5 // pred_check
        _
      $region26: #{tpu_custom_call.1} parent=5 // pred_check_branch
        %149 = sbr.rel (%p146) target = $region28
      $region27: #{tpu_custom_call.1} parent=5 // pred_region
        %s150 = ssub.s32 %s15, 1
        %s151 = sand.u32 %s28, 1
        %s152 = scalar_lea.sflag [#allocation3], %s151
        %s153 = sand.u32 %s28, 1
        %s154 = smul.addr %s153, 1024
        %s155 = scalar_lea.vmem [#allocation2], %s154
        // Predicated region
        $region29: #{tpu_custom_call.1} parent=27 // pred_check
          %p156 = pneg %p41
        $region30: #{tpu_custom_call.1} parent=27 // pred_check_branch
          %158 = sbr.rel (%p156) target = $region32
        $region31: #{tpu_custom_call.1} parent=27 // pred_region
          %160 = dma.done %s152, 16384
        $region32: #{tpu_custom_call.1} parent=27 // pred_fallthru
          _
        // Predicated region
        $region33: #{tpu_custom_call.1} parent=27 // pred_check
          %p161 = pneg %p62
        $region34: #{tpu_custom_call.1} parent=27 // pred_check_branch
          %163 = sbr.rel (%p161) target = $region36
        $region35: #{tpu_custom_call.1} parent=27 // pred_region
          %165 = dma.done [#allocation6], 8192
        $region36: #{tpu_custom_call.1} parent=27 // pred_fallthru
          _
        %s166 = sand.u32 %s28, 1
        %s167 = scalar_lea.sflag [#allocation3], %s166
        %s168 = sand.u32 %s28, 1
        %s169 = smul.addr %s168, 1024
        %s170 = scalar_lea.vmem [#allocation2], %s169
        %p171 = pneg %p41
        %p172 = pneg %p38
        %p173 = pneg %p62
        %p174 = pneg %p59
        %p175 = pneg %p88
        %p176 = pneg %p85
        %s177 = sand.u32 %s75, 1
        %s178 = scalar_lea.sflag [#allocation4], %s177
        %s179 = sand.u32 %s75, 1
        %s180 = smul.addr %s179, 128
        %s181 = scalar_lea.vmem [#allocation7], %s180
        %s182 = smul.u32 32, %s20
        %s183 = smul.u32 32, %s20
        %v184 = vld [vmem:[%s155] sm:$0xff]
        %v185 = vld [vmem:[%s155 + $0x8] sm:$0xff]
        %v186 = vld [vmem:[%s155 + $0x10] sm:$0xff]
        %v187 = vld [vmem:[%s155 + $0x18] sm:$0xff]
        %v188 = vld [vmem:[%s155 + $0x20] sm:$0xff]
        %v189 = vld [vmem:[%s155 + $0x28] sm:$0xff]
        %v190 = vld [vmem:[%s155 + $0x30] sm:$0xff]
        %v191 = vld [vmem:[%s155 + $0x38] sm:$0xff]
        %v192 = vld [vmem:[%s155 + $0x40] sm:$0xff]
        %v193 = vld [vmem:[%s155 + $0x48] sm:$0xff]
        %v194 = vld [vmem:[%s155 + $0x50] sm:$0xff]
        %v195 = vld [vmem:[%s155 + $0x58] sm:$0xff]
        %v196 = vld [vmem:[%s155 + $0x60] sm:$0xff]
        %v197 = vld [vmem:[%s155 + $0x68] sm:$0xff]
        %v198 = vld [vmem:[%s155 + $0x70] sm:$0xff]
        %v199 = vld [vmem:[%s155 + $0x78] sm:$0xff]
        %v200 = vld [vmem:[%s155 + $0x80] sm:$0xff]
        %v201 = vld [vmem:[%s155 + $0x88] sm:$0xff]
        %v202 = vld [vmem:[%s155 + $0x90] sm:$0xff]
        %v203 = vld [vmem:[%s155 + $0x98] sm:$0xff]
        %v204 = vld [vmem:[%s155 + $0xa0] sm:$0xff]
        %v205 = vld [vmem:[%s155 + $0xa8] sm:$0xff]
        %v206 = vld [vmem:[%s155 + $0xb0] sm:$0xff]
        %v207 = vld [vmem:[%s155 + $0xb8] sm:$0xff]
        %v208 = vld [vmem:[%s155 + $0xc0] sm:$0xff]
        %v209 = vld [vmem:[%s155 + $0xc8] sm:$0xff]
        %v210 = vld [vmem:[%s155 + $0xd0] sm:$0xff]
        %v211 = vld [vmem:[%s155 + $0xd8] sm:$0xff]
        %v212 = vld [vmem:[%s155 + $0xe0] sm:$0xff]
        %v213 = vld [vmem:[%s155 + $0xe8] sm:$0xff]
        %v214 = vld [vmem:[%s155 + $0xf0] sm:$0xff]
        %v215 = vld [vmem:[%s155 + $0xf8] sm:$0xff]
        %v216 = vld [vmem:[%s155 + $0x100] sm:$0xff]
        %v217 = vld [vmem:[%s155 + $0x108] sm:$0xff]
        %v218 = vld [vmem:[%s155 + $0x110] sm:$0xff]
        %v219 = vld [vmem:[%s155 + $0x118] sm:$0xff]
        %v220 = vld [vmem:[%s155 + $0x120] sm:$0xff]
        %v221 = vld [vmem:[%s155 + $0x128] sm:$0xff]
        %v222 = vld [vmem:[%s155 + $0x130] sm:$0xff]
        %v223 = vld [vmem:[%s155 + $0x138] sm:$0xff]
        %v224 = vld [vmem:[%s155 + $0x140] sm:$0xff]
        %v225 = vld [vmem:[%s155 + $0x148] sm:$0xff]
        %v226 = vld [vmem:[%s155 + $0x150] sm:$0xff]
        %v227 = vld [vmem:[%s155 + $0x158] sm:$0xff]
        %v228 = vld [vmem:[%s155 + $0x160] sm:$0xff]
        %v229 = vld [vmem:[%s155 + $0x168] sm:$0xff]
        %v230 = vld [vmem:[%s155 + $0x170] sm:$0xff]
        %v231 = vld [vmem:[%s155 + $0x178] sm:$0xff]
        %v232 = vld [vmem:[%s155 + $0x180] sm:$0xff]
        %v233 = vld [vmem:[%s155 + $0x188] sm:$0xff]
        %v234 = vld [vmem:[%s155 + $0x190] sm:$0xff]
        %v235 = vld [vmem:[%s155 + $0x198] sm:$0xff]
        %v236 = vld [vmem:[%s155 + $0x1a0] sm:$0xff]
        %v237 = vld [vmem:[%s155 + $0x1a8] sm:$0xff]
        %v238 = vld [vmem:[%s155 + $0x1b0] sm:$0xff]
        %v239 = vld [vmem:[%s155 + $0x1b8] sm:$0xff]
        %v240 = vld [vmem:[%s155 + $0x1c0] sm:$0xff]
        %v241 = vld [vmem:[%s155 + $0x1c8] sm:$0xff]
        %v242 = vld [vmem:[%s155 + $0x1d0] sm:$0xff]
        %v243 = vld [vmem:[%s155 + $0x1d8] sm:$0xff]
        %v244 = vld [vmem:[%s155 + $0x1e0] sm:$0xff]
        %v245 = vld [vmem:[%s155 + $0x1e8] sm:$0xff]
        %v246 = vld [vmem:[%s155 + $0x1f0] sm:$0xff]
        %v247 = vld [vmem:[%s155 + $0x1f8] sm:$0xff]
        %v248 = vld [vmem:[%s155 + $0x200] sm:$0xff]
        %v249 = vld [vmem:[%s155 + $0x208] sm:$0xff]
        %v250 = vld [vmem:[%s155 + $0x210] sm:$0xff]
        %v251 = vld [vmem:[%s155 + $0x218] sm:$0xff]
        %v252 = vld [vmem:[%s155 + $0x220] sm:$0xff]
        %v253 = vld [vmem:[%s155 + $0x228] sm:$0xff]
        %v254 = vld [vmem:[%s155 + $0x230] sm:$0xff]
        %v255 = vld [vmem:[%s155 + $0x238] sm:$0xff]
        %v256 = vld [vmem:[%s155 + $0x240] sm:$0xff]
        %v257 = vld [vmem:[%s155 + $0x248] sm:$0xff]
        %v258 = vld [vmem:[%s155 + $0x250] sm:$0xff]
        %v259 = vld [vmem:[%s155 + $0x258] sm:$0xff]
        %v260 = vld [vmem:[%s155 + $0x260] sm:$0xff]
        %v261 = vld [vmem:[%s155 + $0x268] sm:$0xff]
        %v262 = vld [vmem:[%s155 + $0x270] sm:$0xff]
        %v263 = vld [vmem:[%s155 + $0x278] sm:$0xff]
        %v264 = vld [vmem:[%s155 + $0x280] sm:$0xff]
        %v265 = vld [vmem:[%s155 + $0x288] sm:$0xff]
        %v266 = vld [vmem:[%s155 + $0x290] sm:$0xff]
        %v267 = vld [vmem:[%s155 + $0x298] sm:$0xff]
        %v268 = vld [vmem:[%s155 + $0x2a0] sm:$0xff]
        %v269 = vld [vmem:[%s155 + $0x2a8] sm:$0xff]
        %v270 = vld [vmem:[%s155 + $0x2b0] sm:$0xff]
        %v271 = vld [vmem:[%s155 + $0x2b8] sm:$0xff]
        %v272 = vld [vmem:[%s155 + $0x2c0] sm:$0xff]
        %v273 = vld [vmem:[%s155 + $0x2c8] sm:$0xff]
        %v274 = vld [vmem:[%s155 + $0x2d0] sm:$0xff]
        %v275 = vld [vmem:[%s155 + $0x2d8] sm:$0xff]
        %v276 = vld [vmem:[%s155 + $0x2e0] sm:$0xff]
        %v277 = vld [vmem:[%s155 + $0x2e8] sm:$0xff]
        %v278 = vld [vmem:[%s155 + $0x2f0] sm:$0xff]
        %v279 = vld [vmem:[%s155 + $0x2f8] sm:$0xff]
        %v280 = vld [vmem:[%s155 + $0x300] sm:$0xff]
        %v281 = vld [vmem:[%s155 + $0x308] sm:$0xff]
        %v282 = vld [vmem:[%s155 + $0x310] sm:$0xff]
        %v283 = vld [vmem:[%s155 + $0x318] sm:$0xff]
        %v284 = vld [vmem:[%s155 + $0x320] sm:$0xff]
        %v285 = vld [vmem:[%s155 + $0x328] sm:$0xff]
        %v286 = vld [vmem:[%s155 + $0x330] sm:$0xff]
        %v287 = vld [vmem:[%s155 + $0x338] sm:$0xff]
        %v288 = vld [vmem:[%s155 + $0x340] sm:$0xff]
        %v289 = vld [vmem:[%s155 + $0x348] sm:$0xff]
        %v290 = vld [vmem:[%s155 + $0x350] sm:$0xff]
        %v291 = vld [vmem:[%s155 + $0x358] sm:$0xff]
        %v292 = vld [vmem:[%s155 + $0x360] sm:$0xff]
        %v293 = vld [vmem:[%s155 + $0x368] sm:$0xff]
        %v294 = vld [vmem:[%s155 + $0x370] sm:$0xff]
        %v295 = vld [vmem:[%s155 + $0x378] sm:$0xff]
        %v296 = vld [vmem:[%s155 + $0x380] sm:$0xff]
        %v297 = vld [vmem:[%s155 + $0x388] sm:$0xff]
        %v298 = vld [vmem:[%s155 + $0x390] sm:$0xff]
        %v299 = vld [vmem:[%s155 + $0x398] sm:$0xff]
        %v300 = vld [vmem:[%s155 + $0x3a0] sm:$0xff]
        %v301 = vld [vmem:[%s155 + $0x3a8] sm:$0xff]
        %v302 = vld [vmem:[%s155 + $0x3b0] sm:$0xff]
        %v303 = vld [vmem:[%s155 + $0x3b8] sm:$0xff]
        %v304 = vld [vmem:[%s155 + $0x3c0] sm:$0xff]
        %v305 = vld [vmem:[%s155 + $0x3c8] sm:$0xff]
        %v306 = vld [vmem:[%s155 + $0x3d0] sm:$0xff]
        %v307 = vld [vmem:[%s155 + $0x3d8] sm:$0xff]
        %v308 = vld [vmem:[%s155 + $0x3e0] sm:$0xff]
        %v309 = vld [vmem:[%s155 + $0x3e8] sm:$0xff]
        %v310 = vld [vmem:[%s155 + $0x3f0] sm:$0xff]
        %v311 = vld [vmem:[%s155 + $0x3f8] sm:$0xff]
        %v312 = vld [vmem:[#allocation5] sm:$0xf]
        %v313 = vld [vmem:[#allocation5 + $0x4] sm:$0xf]
        %v314 = vld [vmem:[#allocation5 + $0x8] sm:$0xf]
        %v315 = vld [vmem:[#allocation5 + $0xc] sm:$0xf]
        %v316 = vld [vmem:[#allocation5 + $0x10] sm:$0xf]
        %v317 = vld [vmem:[#allocation5 + $0x14] sm:$0xf]
        %v318 = vld [vmem:[#allocation5 + $0x18] sm:$0xf]
        %v319 = vld [vmem:[#allocation5 + $0x1c] sm:$0xf]
        %v320 = vld [vmem:[#allocation5 + $0x20] sm:$0xf]
        %v321 = vld [vmem:[#allocation5 + $0x24] sm:$0xf]
        %v322 = vld [vmem:[#allocation5 + $0x28] sm:$0xf]
        %v323 = vld [vmem:[#allocation5 + $0x2c] sm:$0xf]
        %v324 = vld [vmem:[#allocation5 + $0x30] sm:$0xf]
        %v325 = vld [vmem:[#allocation5 + $0x34] sm:$0xf]
        %v326 = vld [vmem:[#allocation5 + $0x38] sm:$0xf]
        %v327 = vld [vmem:[#allocation5 + $0x3c] sm:$0xf]
        %v328 = vld [vmem:[#allocation5 + $0x40] sm:$0xf]
        %v329 = vld [vmem:[#allocation5 + $0x44] sm:$0xf]
        %v330 = vld [vmem:[#allocation5 + $0x48] sm:$0xf]
        %v331 = vld [vmem:[#allocation5 + $0x4c] sm:$0xf]
        %v332 = vld [vmem:[#allocation5 + $0x50] sm:$0xf]
        %v333 = vld [vmem:[#allocation5 + $0x54] sm:$0xf]
        %v334 = vld [vmem:[#allocation5 + $0x58] sm:$0xf]
        %v335 = vld [vmem:[#allocation5 + $0x5c] sm:$0xf]
        %v336 = vld [vmem:[#allocation5 + $0x60] sm:$0xf]
        %v337 = vld [vmem:[#allocation5 + $0x64] sm:$0xf]
        %v338 = vld [vmem:[#allocation5 + $0x68] sm:$0xf]
        %v339 = vld [vmem:[#allocation5 + $0x6c] sm:$0xf]
        %v340 = vld [vmem:[#allocation5 + $0x70] sm:$0xf]
        %v341 = vld [vmem:[#allocation5 + $0x74] sm:$0xf]
        %v342 = vld [vmem:[#allocation5 + $0x78] sm:$0xf]
        %v343 = vld [vmem:[#allocation5 + $0x7c] sm:$0xf]
        %v344 = vld [vmem:[#allocation5 + $0x80] sm:$0xf]
        %v345 = vld [vmem:[#allocation5 + $0x84] sm:$0xf]
        %v346 = vld [vmem:[#allocation5 + $0x88] sm:$0xf]
        %v347 = vld [vmem:[#allocation5 + $0x8c] sm:$0xf]
        %v348 = vld [vmem:[#allocation5 + $0x90] sm:$0xf]
        %v349 = vld [vmem:[#allocation5 + $0x94] sm:$0xf]
        %v350 = vld [vmem:[#allocation5 + $0x98] sm:$0xf]
        %v351 = vld [vmem:[#allocation5 + $0x9c] sm:$0xf]
        %v352 = vld [vmem:[#allocation5 + $0xa0] sm:$0xf]
        %v353 = vld [vmem:[#allocation5 + $0xa4] sm:$0xf]
        %v354 = vld [vmem:[#allocation5 + $0xa8] sm:$0xf]
        %v355 = vld [vmem:[#allocation5 + $0xac] sm:$0xf]
        %v356 = vld [vmem:[#allocation5 + $0xb0] sm:$0xf]
        %v357 = vld [vmem:[#allocation5 + $0xb4] sm:$0xf]
        %v358 = vld [vmem:[#allocation5 + $0xb8] sm:$0xf]
        %v359 = vld [vmem:[#allocation5 + $0xbc] sm:$0xf]
        %v360 = vld [vmem:[#allocation5 + $0xc0] sm:$0xf]
        %v361 = vld [vmem:[#allocation5 + $0xc4] sm:$0xf]
        %v362 = vld [vmem:[#allocation5 + $0xc8] sm:$0xf]
        %v363 = vld [vmem:[#allocation5 + $0xcc] sm:$0xf]
        %v364 = vld [vmem:[#allocation5 + $0xd0] sm:$0xf]
        %v365 = vld [vmem:[#allocation5 + $0xd4] sm:$0xf]
        %v366 = vld [vmem:[#allocation5 + $0xd8] sm:$0xf]
        %v367 = vld [vmem:[#allocation5 + $0xdc] sm:$0xf]
        %v368 = vld [vmem:[#allocation5 + $0xe0] sm:$0xf]
        %v369 = vld [vmem:[#allocation5 + $0xe4] sm:$0xf]
        %v370 = vld [vmem:[#allocation5 + $0xe8] sm:$0xf]
        %v371 = vld [vmem:[#allocation5 + $0xec] sm:$0xf]
        %v372 = vld [vmem:[#allocation5 + $0xf0] sm:$0xf]
        %v373 = vld [vmem:[#allocation5 + $0xf4] sm:$0xf]
        %v374 = vld [vmem:[#allocation5 + $0xf8] sm:$0xf]
        %v375 = vld [vmem:[#allocation5 + $0xfc] sm:$0xf]
        %v376 = vld [vmem:[#allocation5 + $0x100] sm:$0xf]
        %v377 = vld [vmem:[#allocation5 + $0x104] sm:$0xf]
        %v378 = vld [vmem:[#allocation5 + $0x108] sm:$0xf]
        %v379 = vld [vmem:[#allocation5 + $0x10c] sm:$0xf]
        %v380 = vld [vmem:[#allocation5 + $0x110] sm:$0xf]
        %v381 = vld [vmem:[#allocation5 + $0x114] sm:$0xf]
        %v382 = vld [vmem:[#allocation5 + $0x118] sm:$0xf]
        %v383 = vld [vmem:[#allocation5 + $0x11c] sm:$0xf]
        %v384 = vld [vmem:[#allocation5 + $0x120] sm:$0xf]
        %v385 = vld [vmem:[#allocation5 + $0x124] sm:$0xf]
        %v386 = vld [vmem:[#allocation5 + $0x128] sm:$0xf]
        %v387 = vld [vmem:[#allocation5 + $0x12c] sm:$0xf]
        %v388 = vld [vmem:[#allocation5 + $0x130] sm:$0xf]
        %v389 = vld [vmem:[#allocation5 + $0x134] sm:$0xf]
        %v390 = vld [vmem:[#allocation5 + $0x138] sm:$0xf]
        %v391 = vld [vmem:[#allocation5 + $0x13c] sm:$0xf]
        %v392 = vld [vmem:[#allocation5 + $0x140] sm:$0xf]
        %v393 = vld [vmem:[#allocation5 + $0x144] sm:$0xf]
        %v394 = vld [vmem:[#allocation5 + $0x148] sm:$0xf]
        %v395 = vld [vmem:[#allocation5 + $0x14c] sm:$0xf]
        %v396 = vld [vmem:[#allocation5 + $0x150] sm:$0xf]
        %v397 = vld [vmem:[#allocation5 + $0x154] sm:$0xf]
        %v398 = vld [vmem:[#allocation5 + $0x158] sm:$0xf]
        %v399 = vld [vmem:[#allocation5 + $0x15c] sm:$0xf]
        %v400 = vld [vmem:[#allocation5 + $0x160] sm:$0xf]
        %v401 = vld [vmem:[#allocation5 + $0x164] sm:$0xf]
        %v402 = vld [vmem:[#allocation5 + $0x168] sm:$0xf]
        %v403 = vld [vmem:[#allocation5 + $0x16c] sm:$0xf]
        %v404 = vld [vmem:[#allocation5 + $0x170] sm:$0xf]
        %v405 = vld [vmem:[#allocation5 + $0x174] sm:$0xf]
        %v406 = vld [vmem:[#allocation5 + $0x178] sm:$0xf]
        %v407 = vld [vmem:[#allocation5 + $0x17c] sm:$0xf]
        %v408 = vld [vmem:[#allocation5 + $0x180] sm:$0xf]
        %v409 = vld [vmem:[#allocation5 + $0x184] sm:$0xf]
        %v410 = vld [vmem:[#allocation5 + $0x188] sm:$0xf]
        %v411 = vld [vmem:[#allocation5 + $0x18c] sm:$0xf]
        %v412 = vld [vmem:[#allocation5 + $0x190] sm:$0xf]
        %v413 = vld [vmem:[#allocation5 + $0x194] sm:$0xf]
        %v414 = vld [vmem:[#allocation5 + $0x198] sm:$0xf]
        %v415 = vld [vmem:[#allocation5 + $0x19c] sm:$0xf]
        %v416 = vld [vmem:[#allocation5 + $0x1a0] sm:$0xf]
        %v417 = vld [vmem:[#allocation5 + $0x1a4] sm:$0xf]
        %v418 = vld [vmem:[#allocation5 + $0x1a8] sm:$0xf]
        %v419 = vld [vmem:[#allocation5 + $0x1ac] sm:$0xf]
        %v420 = vld [vmem:[#allocation5 + $0x1b0] sm:$0xf]
        %v421 = vld [vmem:[#allocation5 + $0x1b4] sm:$0xf]
        %v422 = vld [vmem:[#allocation5 + $0x1b8] sm:$0xf]
        %v423 = vld [vmem:[#allocation5 + $0x1bc] sm:$0xf]
        %v424 = vld [vmem:[#allocation5 + $0x1c0] sm:$0xf]
        %v425 = vld [vmem:[#allocation5 + $0x1c4] sm:$0xf]
        %v426 = vld [vmem:[#allocation5 + $0x1c8] sm:$0xf]
        %v427 = vld [vmem:[#allocation5 + $0x1cc] sm:$0xf]
        %v428 = vld [vmem:[#allocation5 + $0x1d0] sm:$0xf]
        %v429 = vld [vmem:[#allocation5 + $0x1d4] sm:$0xf]
        %v430 = vld [vmem:[#allocation5 + $0x1d8] sm:$0xf]
        %v431 = vld [vmem:[#allocation5 + $0x1dc] sm:$0xf]
        %v432 = vld [vmem:[#allocation5 + $0x1e0] sm:$0xf]
        %v433 = vld [vmem:[#allocation5 + $0x1e4] sm:$0xf]
        %v434 = vld [vmem:[#allocation5 + $0x1e8] sm:$0xf]
        %v435 = vld [vmem:[#allocation5 + $0x1ec] sm:$0xf]
        %v436 = vld [vmem:[#allocation5 + $0x1f0] sm:$0xf]
        %v437 = vld [vmem:[#allocation5 + $0x1f4] sm:$0xf]
        %v438 = vld [vmem:[#allocation5 + $0x1f8] sm:$0xf]
        %v439 = vld [vmem:[#allocation5 + $0x1fc] sm:$0xf]
        %v568 = vunpack.c.l.b16 %v184
        %v569 = vunpack.c.h.b16 %v184
        %v570 = vunpack.c.l.b16 %v185
        %v571 = vunpack.c.h.b16 %v185
        %v572 = vunpack.c.l.b16 %v186
        %v573 = vunpack.c.h.b16 %v186
        %v574 = vunpack.c.l.b16 %v187
        %v575 = vunpack.c.h.b16 %v187
        %v576 = vunpack.c.l.b16 %v188
        %v577 = vunpack.c.h.b16 %v188
        %v578 = vunpack.c.l.b16 %v189
        %v579 = vunpack.c.h.b16 %v189
        %v580 = vunpack.c.l.b16 %v190
        %v581 = vunpack.c.h.b16 %v190
        %v582 = vunpack.c.l.b16 %v191
        %v583 = vunpack.c.h.b16 %v191
        %v584 = vunpack.c.l.b16 %v192
        %v585 = vunpack.c.h.b16 %v192
        %v586 = vunpack.c.l.b16 %v193
        %v587 = vunpack.c.h.b16 %v193
        %v588 = vunpack.c.l.b16 %v194
        %v589 = vunpack.c.h.b16 %v194
        %v590 = vunpack.c.l.b16 %v195
        %v591 = vunpack.c.h.b16 %v195
        %v592 = vunpack.c.l.b16 %v196
        %v593 = vunpack.c.h.b16 %v196
        %v594 = vunpack.c.l.b16 %v197
        %v595 = vunpack.c.h.b16 %v197
        %v596 = vunpack.c.l.b16 %v198
        %v597 = vunpack.c.h.b16 %v198
        %v598 = vunpack.c.l.b16 %v199
        %v599 = vunpack.c.h.b16 %v199
        %v600 = vunpack.c.l.b16 %v200
        %v601 = vunpack.c.h.b16 %v200
        %v602 = vunpack.c.l.b16 %v201
        %v603 = vunpack.c.h.b16 %v201
        %v604 = vunpack.c.l.b16 %v202
        %v605 = vunpack.c.h.b16 %v202
        %v606 = vunpack.c.l.b16 %v203
        %v607 = vunpack.c.h.b16 %v203
        %v608 = vunpack.c.l.b16 %v204
        %v609 = vunpack.c.h.b16 %v204
        %v610 = vunpack.c.l.b16 %v205
        %v611 = vunpack.c.h.b16 %v205
        %v612 = vunpack.c.l.b16 %v206
        %v613 = vunpack.c.h.b16 %v206
        %v614 = vunpack.c.l.b16 %v207
        %v615 = vunpack.c.h.b16 %v207
        %v616 = vunpack.c.l.b16 %v208
        %v617 = vunpack.c.h.b16 %v208
        %v618 = vunpack.c.l.b16 %v209
        %v619 = vunpack.c.h.b16 %v209
        %v620 = vunpack.c.l.b16 %v210
        %v621 = vunpack.c.h.b16 %v210
        %v622 = vunpack.c.l.b16 %v211
        %v623 = vunpack.c.h.b16 %v211
        %v624 = vunpack.c.l.b16 %v212
        %v625 = vunpack.c.h.b16 %v212
        %v626 = vunpack.c.l.b16 %v213
        %v627 = vunpack.c.h.b16 %v213
        %v628 = vunpack.c.l.b16 %v214
        %v629 = vunpack.c.h.b16 %v214
        %v630 = vunpack.c.l.b16 %v215
        %v631 = vunpack.c.h.b16 %v215
        %v632 = vunpack.c.l.b16 %v216
        %v633 = vunpack.c.h.b16 %v216
        %v634 = vunpack.c.l.b16 %v217
        %v635 = vunpack.c.h.b16 %v217
        %v636 = vunpack.c.l.b16 %v218
        %v637 = vunpack.c.h.b16 %v218
        %v638 = vunpack.c.l.b16 %v219
        %v639 = vunpack.c.h.b16 %v219
        %v640 = vunpack.c.l.b16 %v220
        %v641 = vunpack.c.h.b16 %v220
        %v642 = vunpack.c.l.b16 %v221
        %v643 = vunpack.c.h.b16 %v221
        %v644 = vunpack.c.l.b16 %v222
        %v645 = vunpack.c.h.b16 %v222
        %v646 = vunpack.c.l.b16 %v223
        %v647 = vunpack.c.h.b16 %v223
        %v648 = vunpack.c.l.b16 %v224
        %v649 = vunpack.c.h.b16 %v224
        %v650 = vunpack.c.l.b16 %v225
        %v651 = vunpack.c.h.b16 %v225
        %v652 = vunpack.c.l.b16 %v226
        %v653 = vunpack.c.h.b16 %v226
        %v654 = vunpack.c.l.b16 %v227
        %v655 = vunpack.c.h.b16 %v227
        %v656 = vunpack.c.l.b16 %v228
        %v657 = vunpack.c.h.b16 %v228
        %v658 = vunpack.c.l.b16 %v229
        %v659 = vunpack.c.h.b16 %v229
        %v660 = vunpack.c.l.b16 %v230
        %v661 = vunpack.c.h.b16 %v230
        %v662 = vunpack.c.l.b16 %v231
        %v663 = vunpack.c.h.b16 %v231
        %v664 = vunpack.c.l.b16 %v232
        %v665 = vunpack.c.h.b16 %v232
        %v666 = vunpack.c.l.b16 %v233
        %v667 = vunpack.c.h.b16 %v233
        %v668 = vunpack.c.l.b16 %v234
        %v669 = vunpack.c.h.b16 %v234
        %v670 = vunpack.c.l.b16 %v235
        %v671 = vunpack.c.h.b16 %v235
        %v672 = vunpack.c.l.b16 %v236
        %v673 = vunpack.c.h.b16 %v236
        %v674 = vunpack.c.l.b16 %v237
        %v675 = vunpack.c.h.b16 %v237
        %v676 = vunpack.c.l.b16 %v238
        %v677 = vunpack.c.h.b16 %v238
        %v678 = vunpack.c.l.b16 %v239
        %v679 = vunpack.c.h.b16 %v239
        %v680 = vunpack.c.l.b16 %v240
        %v681 = vunpack.c.h.b16 %v240
        %v682 = vunpack.c.l.b16 %v241
        %v683 = vunpack.c.h.b16 %v241
        %v684 = vunpack.c.l.b16 %v242
        %v685 = vunpack.c.h.b16 %v242
        %v686 = vunpack.c.l.b16 %v243
        %v687 = vunpack.c.h.b16 %v243
        %v688 = vunpack.c.l.b16 %v244
        %v689 = vunpack.c.h.b16 %v244
        %v690 = vunpack.c.l.b16 %v245
        %v691 = vunpack.c.h.b16 %v245
        %v692 = vunpack.c.l.b16 %v246
        %v693 = vunpack.c.h.b16 %v246
        %v694 = vunpack.c.l.b16 %v247
        %v695 = vunpack.c.h.b16 %v247
        %v696 = vunpack.c.l.b16 %v248
        %v697 = vunpack.c.h.b16 %v248
        %v698 = vunpack.c.l.b16 %v249
        %v699 = vunpack.c.h.b16 %v249
        %v700 = vunpack.c.l.b16 %v250
        %v701 = vunpack.c.h.b16 %v250
        %v702 = vunpack.c.l.b16 %v251
        %v703 = vunpack.c.h.b16 %v251
        %v704 = vunpack.c.l.b16 %v252
        %v705 = vunpack.c.h.b16 %v252
        %v706 = vunpack.c.l.b16 %v253
        %v707 = vunpack.c.h.b16 %v253
        %v708 = vunpack.c.l.b16 %v254
        %v709 = vunpack.c.h.b16 %v254
        %v710 = vunpack.c.l.b16 %v255
        %v711 = vunpack.c.h.b16 %v255
        %v712 = vunpack.c.l.b16 %v256
        %v713 = vunpack.c.h.b16 %v256
        %v714 = vunpack.c.l.b16 %v257
        %v715 = vunpack.c.h.b16 %v257
        %v716 = vunpack.c.l.b16 %v258
        %v717 = vunpack.c.h.b16 %v258
        %v718 = vunpack.c.l.b16 %v259
        %v719 = vunpack.c.h.b16 %v259
        %v720 = vunpack.c.l.b16 %v260
        %v721 = vunpack.c.h.b16 %v260
        %v722 = vunpack.c.l.b16 %v261
        %v723 = vunpack.c.h.b16 %v261
        %v724 = vunpack.c.l.b16 %v262
        %v725 = vunpack.c.h.b16 %v262
        %v726 = vunpack.c.l.b16 %v263
        %v727 = vunpack.c.h.b16 %v263
        %v728 = vunpack.c.l.b16 %v264
        %v729 = vunpack.c.h.b16 %v264
        %v730 = vunpack.c.l.b16 %v265
        %v731 = vunpack.c.h.b16 %v265
        %v732 = vunpack.c.l.b16 %v266
        %v733 = vunpack.c.h.b16 %v266
        %v734 = vunpack.c.l.b16 %v267
        %v735 = vunpack.c.h.b16 %v267
        %v736 = vunpack.c.l.b16 %v268
        %v737 = vunpack.c.h.b16 %v268
        %v738 = vunpack.c.l.b16 %v269
        %v739 = vunpack.c.h.b16 %v269
        %v740 = vunpack.c.l.b16 %v270
        %v741 = vunpack.c.h.b16 %v270
        %v742 = vunpack.c.l.b16 %v271
        %v743 = vunpack.c.h.b16 %v271
        %v744 = vunpack.c.l.b16 %v272
        %v745 = vunpack.c.h.b16 %v272
        %v746 = vunpack.c.l.b16 %v273
        %v747 = vunpack.c.h.b16 %v273
        %v748 = vunpack.c.l.b16 %v274
        %v749 = vunpack.c.h.b16 %v274
        %v750 = vunpack.c.l.b16 %v275
        %v751 = vunpack.c.h.b16 %v275
        %v752 = vunpack.c.l.b16 %v276
        %v753 = vunpack.c.h.b16 %v276
        %v754 = vunpack.c.l.b16 %v277
        %v755 = vunpack.c.h.b16 %v277
        %v756 = vunpack.c.l.b16 %v278
        %v757 = vunpack.c.h.b16 %v278
        %v758 = vunpack.c.l.b16 %v279
        %v759 = vunpack.c.h.b16 %v279
        %v760 = vunpack.c.l.b16 %v280
        %v761 = vunpack.c.h.b16 %v280
        %v762 = vunpack.c.l.b16 %v281
        %v763 = vunpack.c.h.b16 %v281
        %v764 = vunpack.c.l.b16 %v282
        %v765 = vunpack.c.h.b16 %v282
        %v766 = vunpack.c.l.b16 %v283
        %v767 = vunpack.c.h.b16 %v283
        %v768 = vunpack.c.l.b16 %v284
        %v769 = vunpack.c.h.b16 %v284
        %v770 = vunpack.c.l.b16 %v285
        %v771 = vunpack.c.h.b16 %v285
        %v772 = vunpack.c.l.b16 %v286
        %v773 = vunpack.c.h.b16 %v286
        %v774 = vunpack.c.l.b16 %v287
        %v775 = vunpack.c.h.b16 %v287
        %v776 = vunpack.c.l.b16 %v288
        %v777 = vunpack.c.h.b16 %v288
        %v778 = vunpack.c.l.b16 %v289
        %v779 = vunpack.c.h.b16 %v289
        %v780 = vunpack.c.l.b16 %v290
        %v781 = vunpack.c.h.b16 %v290
        %v782 = vunpack.c.l.b16 %v291
        %v783 = vunpack.c.h.b16 %v291
        %v784 = vunpack.c.l.b16 %v292
        %v785 = vunpack.c.h.b16 %v292
        %v786 = vunpack.c.l.b16 %v293
        %v787 = vunpack.c.h.b16 %v293
        %v788 = vunpack.c.l.b16 %v294
        %v789 = vunpack.c.h.b16 %v294
        %v790 = vunpack.c.l.b16 %v295
        %v791 = vunpack.c.h.b16 %v295
        %v792 = vunpack.c.l.b16 %v296
        %v793 = vunpack.c.h.b16 %v296
        %v794 = vunpack.c.l.b16 %v297
        %v795 = vunpack.c.h.b16 %v297
        %v796 = vunpack.c.l.b16 %v298
        %v797 = vunpack.c.h.b16 %v298
        %v798 = vunpack.c.l.b16 %v299
        %v799 = vunpack.c.h.b16 %v299
        %v800 = vunpack.c.l.b16 %v300
        %v801 = vunpack.c.h.b16 %v300
        %v802 = vunpack.c.l.b16 %v301
        %v803 = vunpack.c.h.b16 %v301
        %v804 = vunpack.c.l.b16 %v302
        %v805 = vunpack.c.h.b16 %v302
        %v806 = vunpack.c.l.b16 %v303
        %v807 = vunpack.c.h.b16 %v303
        %v808 = vunpack.c.l.b16 %v304
        %v809 = vunpack.c.h.b16 %v304
        %v810 = vunpack.c.l.b16 %v305
        %v811 = vunpack.c.h.b16 %v305
        %v812 = vunpack.c.l.b16 %v306
        %v813 = vunpack.c.h.b16 %v306
        %v814 = vunpack.c.l.b16 %v307
        %v815 = vunpack.c.h.b16 %v307
        %v816 = vunpack.c.l.b16 %v308
        %v817 = vunpack.c.h.b16 %v308
        %v818 = vunpack.c.l.b16 %v309
        %v819 = vunpack.c.h.b16 %v309
        %v820 = vunpack.c.l.b16 %v310
        %v821 = vunpack.c.h.b16 %v310
        %v822 = vunpack.c.l.b16 %v311
        %v823 = vunpack.c.h.b16 %v311
        %v824 = vpack.c.b16 %v576, %v568
        %v825 = vpack.c.b16 %v577, %v569
        %v826 = vpack.c.b16 %v578, %v570
        %v827 = vpack.c.b16 %v579, %v571
        %v828 = vpack.c.b16 %v580, %v572
        %v829 = vpack.c.b16 %v581, %v573
        %v830 = vpack.c.b16 %v582, %v574
        %v831 = vpack.c.b16 %v583, %v575
        %v832 = vpack.c.b16 %v592, %v584
        %v833 = vpack.c.b16 %v593, %v585
        %v834 = vpack.c.b16 %v594, %v586
        %v835 = vpack.c.b16 %v595, %v587
        %v836 = vpack.c.b16 %v596, %v588
        %v837 = vpack.c.b16 %v597, %v589
        %v838 = vpack.c.b16 %v598, %v590
        %v839 = vpack.c.b16 %v599, %v591
        %v840 = vpack.c.b16 %v608, %v600
        %v841 = vpack.c.b16 %v609, %v601
        %v842 = vpack.c.b16 %v610, %v602
        %v843 = vpack.c.b16 %v611, %v603
        %v844 = vpack.c.b16 %v612, %v604
        %v845 = vpack.c.b16 %v613, %v605
        %v846 = vpack.c.b16 %v614, %v606
        %v847 = vpack.c.b16 %v615, %v607
        %v848 = vpack.c.b16 %v624, %v616
        %v849 = vpack.c.b16 %v625, %v617
        %v850 = vpack.c.b16 %v626, %v618
        %v851 = vpack.c.b16 %v627, %v619
        %v852 = vpack.c.b16 %v628, %v620
        %v853 = vpack.c.b16 %v629, %v621
        %v854 = vpack.c.b16 %v630, %v622
        %v855 = vpack.c.b16 %v631, %v623
        %v856 = vpack.c.b16 %v640, %v632
        %v857 = vpack.c.b16 %v641, %v633
        %v858 = vpack.c.b16 %v642, %v634
        %v859 = vpack.c.b16 %v643, %v635
        %v860 = vpack.c.b16 %v644, %v636
        %v861 = vpack.c.b16 %v645, %v637
        %v862 = vpack.c.b16 %v646, %v638
        %v863 = vpack.c.b16 %v647, %v639
        %v864 = vpack.c.b16 %v656, %v648
        %v865 = vpack.c.b16 %v657, %v649
        %v866 = vpack.c.b16 %v658, %v650
        %v867 = vpack.c.b16 %v659, %v651
        %v868 = vpack.c.b16 %v660, %v652
        %v869 = vpack.c.b16 %v661, %v653
        %v870 = vpack.c.b16 %v662, %v654
        %v871 = vpack.c.b16 %v663, %v655
        %v872 = vpack.c.b16 %v672, %v664
        %v873 = vpack.c.b16 %v673, %v665
        %v874 = vpack.c.b16 %v674, %v666
        %v875 = vpack.c.b16 %v675, %v667
        %v876 = vpack.c.b16 %v676, %v668
        %v877 = vpack.c.b16 %v677, %v669
        %v878 = vpack.c.b16 %v678, %v670
        %v879 = vpack.c.b16 %v679, %v671
        %v880 = vpack.c.b16 %v688, %v680
        %v881 = vpack.c.b16 %v689, %v681
        %v882 = vpack.c.b16 %v690, %v682
        %v883 = vpack.c.b16 %v691, %v683
        %v884 = vpack.c.b16 %v692, %v684
        %v885 = vpack.c.b16 %v693, %v685
        %v886 = vpack.c.b16 %v694, %v686
        %v887 = vpack.c.b16 %v695, %v687
        %v888 = vpack.c.b16 %v704, %v696
        %v889 = vpack.c.b16 %v705, %v697
        %v890 = vpack.c.b16 %v706, %v698
        %v891 = vpack.c.b16 %v707, %v699
        %v892 = vpack.c.b16 %v708, %v700
        %v893 = vpack.c.b16 %v709, %v701
        %v894 = vpack.c.b16 %v710, %v702
        %v895 = vpack.c.b16 %v711, %v703
        %v896 = vpack.c.b16 %v720, %v712
        %v897 = vpack.c.b16 %v721, %v713
        %v898 = vpack.c.b16 %v722, %v714
        %v899 = vpack.c.b16 %v723, %v715
        %v900 = vpack.c.b16 %v724, %v716
        %v901 = vpack.c.b16 %v725, %v717
        %v902 = vpack.c.b16 %v726, %v718
        %v903 = vpack.c.b16 %v727, %v719
        %v904 = vpack.c.b16 %v736, %v728
        %v905 = vpack.c.b16 %v737, %v729
        %v906 = vpack.c.b16 %v738, %v730
        %v907 = vpack.c.b16 %v739, %v731
        %v908 = vpack.c.b16 %v740, %v732
        %v909 = vpack.c.b16 %v741, %v733
        %v910 = vpack.c.b16 %v742, %v734
        %v911 = vpack.c.b16 %v743, %v735
        %v912 = vpack.c.b16 %v752, %v744
        %v913 = vpack.c.b16 %v753, %v745
        %v914 = vpack.c.b16 %v754, %v746
        %v915 = vpack.c.b16 %v755, %v747
        %v916 = vpack.c.b16 %v756, %v748
        %v917 = vpack.c.b16 %v757, %v749
        %v918 = vpack.c.b16 %v758, %v750
        %v919 = vpack.c.b16 %v759, %v751
        %v920 = vpack.c.b16 %v768, %v760
        %v921 = vpack.c.b16 %v769, %v761
        %v922 = vpack.c.b16 %v770, %v762
        %v923 = vpack.c.b16 %v771, %v763
        %v924 = vpack.c.b16 %v772, %v764
        %v925 = vpack.c.b16 %v773, %v765
        %v926 = vpack.c.b16 %v774, %v766
        %v927 = vpack.c.b16 %v775, %v767
        %v928 = vpack.c.b16 %v784, %v776
        %v929 = vpack.c.b16 %v785, %v777
        %v930 = vpack.c.b16 %v786, %v778
        %v931 = vpack.c.b16 %v787, %v779
        %v932 = vpack.c.b16 %v788, %v780
        %v933 = vpack.c.b16 %v789, %v781
        %v934 = vpack.c.b16 %v790, %v782
        %v935 = vpack.c.b16 %v791, %v783
        %v936 = vpack.c.b16 %v800, %v792
        %v937 = vpack.c.b16 %v801, %v793
        %v938 = vpack.c.b16 %v802, %v794
        %v939 = vpack.c.b16 %v803, %v795
        %v940 = vpack.c.b16 %v804, %v796
        %v941 = vpack.c.b16 %v805, %v797
        %v942 = vpack.c.b16 %v806, %v798
        %v943 = vpack.c.b16 %v807, %v799
        %v944 = vpack.c.b16 %v816, %v808
        %v945 = vpack.c.b16 %v817, %v809
        %v946 = vpack.c.b16 %v818, %v810
        %v947 = vpack.c.b16 %v819, %v811
        %v948 = vpack.c.b16 %v820, %v812
        %v949 = vpack.c.b16 %v821, %v813
        %v950 = vpack.c.b16 %v822, %v814
        %v951 = vpack.c.b16 %v823, %v815
        %v1208 = vunpack.c.l.b16 %v312
        %v1209 = vunpack.c.l.b16 %v313
        %v1210 = vunpack.c.l.b16 %v314
        %v1211 = vunpack.c.l.b16 %v315
        %v1212 = vunpack.c.l.b16 %v316
        %v1213 = vunpack.c.l.b16 %v317
        %v1214 = vunpack.c.l.b16 %v318
        %v1215 = vunpack.c.l.b16 %v319
        %v1216 = vunpack.c.l.b16 %v320
        %v1217 = vunpack.c.l.b16 %v321
        %v1218 = vunpack.c.l.b16 %v322
        %v1219 = vunpack.c.l.b16 %v323
        %v1220 = vunpack.c.l.b16 %v324
        %v1221 = vunpack.c.l.b16 %v325
        %v1222 = vunpack.c.l.b16 %v326
        %v1223 = vunpack.c.l.b16 %v327
        %v1224 = vunpack.c.l.b16 %v328
        %v1225 = vunpack.c.l.b16 %v329
        %v1226 = vunpack.c.l.b16 %v330
        %v1227 = vunpack.c.l.b16 %v331
        %v1228 = vunpack.c.l.b16 %v332
        %v1229 = vunpack.c.l.b16 %v333
        %v1230 = vunpack.c.l.b16 %v334
        %v1231 = vunpack.c.l.b16 %v335
        %v1232 = vunpack.c.l.b16 %v336
        %v1233 = vunpack.c.l.b16 %v337
        %v1234 = vunpack.c.l.b16 %v338
        %v1235 = vunpack.c.l.b16 %v339
        %v1236 = vunpack.c.l.b16 %v340
        %v1237 = vunpack.c.l.b16 %v341
        %v1238 = vunpack.c.l.b16 %v342
        %v1239 = vunpack.c.l.b16 %v343
        %v1240 = vunpack.c.l.b16 %v344
        %v1241 = vunpack.c.l.b16 %v345
        %v1242 = vunpack.c.l.b16 %v346
        %v1243 = vunpack.c.l.b16 %v347
        %v1244 = vunpack.c.l.b16 %v348
        %v1245 = vunpack.c.l.b16 %v349
        %v1246 = vunpack.c.l.b16 %v350
        %v1247 = vunpack.c.l.b16 %v351
        %v1248 = vunpack.c.l.b16 %v352
        %v1249 = vunpack.c.l.b16 %v353
        %v1250 = vunpack.c.l.b16 %v354
        %v1251 = vunpack.c.l.b16 %v355
        %v1252 = vunpack.c.l.b16 %v356
        %v1253 = vunpack.c.l.b16 %v357
        %v1254 = vunpack.c.l.b16 %v358
        %v1255 = vunpack.c.l.b16 %v359
        %v1256 = vunpack.c.l.b16 %v360
        %v1257 = vunpack.c.l.b16 %v361
        %v1258 = vunpack.c.l.b16 %v362
        %v1259 = vunpack.c.l.b16 %v363
        %v1260 = vunpack.c.l.b16 %v364
        %v1261 = vunpack.c.l.b16 %v365
        %v1262 = vunpack.c.l.b16 %v366
        %v1263 = vunpack.c.l.b16 %v367
        %v1264 = vunpack.c.l.b16 %v368
        %v1265 = vunpack.c.l.b16 %v369
        %v1266 = vunpack.c.l.b16 %v370
        %v1267 = vunpack.c.l.b16 %v371
        %v1268 = vunpack.c.l.b16 %v372
        %v1269 = vunpack.c.l.b16 %v373
        %v1270 = vunpack.c.l.b16 %v374
        %v1271 = vunpack.c.l.b16 %v375
        %v1272 = vunpack.c.l.b16 %v376
        %v1273 = vunpack.c.l.b16 %v377
        %v1274 = vunpack.c.l.b16 %v378
        %v1275 = vunpack.c.l.b16 %v379
        %v1276 = vunpack.c.l.b16 %v380
        %v1277 = vunpack.c.l.b16 %v381
        %v1278 = vunpack.c.l.b16 %v382
        %v1279 = vunpack.c.l.b16 %v383
        %v1280 = vunpack.c.l.b16 %v384
        %v1281 = vunpack.c.l.b16 %v385
        %v1282 = vunpack.c.l.b16 %v386
        %v1283 = vunpack.c.l.b16 %v387
        %v1284 = vunpack.c.l.b16 %v388
        %v1285 = vunpack.c.l.b16 %v389
        %v1286 = vunpack.c.l.b16 %v390
        %v1287 = vunpack.c.l.b16 %v391
        %v1288 = vunpack.c.l.b16 %v392
        %v1289 = vunpack.c.l.b16 %v393
        %v1290 = vunpack.c.l.b16 %v394
        %v1291 = vunpack.c.l.b16 %v395
        %v1292 = vunpack.c.l.b16 %v396
        %v1293 = vunpack.c.l.b16 %v397
        %v1294 = vunpack.c.l.b16 %v398
        %v1295 = vunpack.c.l.b16 %v399
        %v1296 = vunpack.c.l.b16 %v400
        %v1297 = vunpack.c.l.b16 %v401
        %v1298 = vunpack.c.l.b16 %v402
        %v1299 = vunpack.c.l.b16 %v403
        %v1300 = vunpack.c.l.b16 %v404
        %v1301 = vunpack.c.l.b16 %v405
        %v1302 = vunpack.c.l.b16 %v406
        %v1303 = vunpack.c.l.b16 %v407
        %v1304 = vunpack.c.l.b16 %v408
        %v1305 = vunpack.c.l.b16 %v409
        %v1306 = vunpack.c.l.b16 %v410
        %v1307 = vunpack.c.l.b16 %v411
        %v1308 = vunpack.c.l.b16 %v412
        %v1309 = vunpack.c.l.b16 %v413
        %v1310 = vunpack.c.l.b16 %v414
        %v1311 = vunpack.c.l.b16 %v415
        %v1312 = vunpack.c.l.b16 %v416
        %v1313 = vunpack.c.l.b16 %v417
        %v1314 = vunpack.c.l.b16 %v418
        %v1315 = vunpack.c.l.b16 %v419
        %v1316 = vunpack.c.l.b16 %v420
        %v1317 = vunpack.c.l.b16 %v421
        %v1318 = vunpack.c.l.b16 %v422
        %v1319 = vunpack.c.l.b16 %v423
        %v1320 = vunpack.c.l.b16 %v424
        %v1321 = vunpack.c.l.b16 %v425
        %v1322 = vunpack.c.l.b16 %v426
        %v1323 = vunpack.c.l.b16 %v427
        %v1324 = vunpack.c.l.b16 %v428
        %v1325 = vunpack.c.l.b16 %v429
        %v1326 = vunpack.c.l.b16 %v430
        %v1327 = vunpack.c.l.b16 %v431
        %v1328 = vunpack.c.l.b16 %v432
        %v1329 = vunpack.c.l.b16 %v433
        %v1330 = vunpack.c.l.b16 %v434
        %v1331 = vunpack.c.l.b16 %v435
        %v1332 = vunpack.c.l.b16 %v436
        %v1333 = vunpack.c.l.b16 %v437
        %v1334 = vunpack.c.l.b16 %v438
        %v1335 = vunpack.c.l.b16 %v439
        %v1336 = vpack.c.b16 %v1209, %v1208
        %v1337 = vpack.c.b16 %v1211, %v1210
        %v1338 = vpack.c.b16 %v1213, %v1212
        %v1339 = vpack.c.b16 %v1215, %v1214
        %v1340 = vpack.c.b16 %v1217, %v1216
        %v1341 = vpack.c.b16 %v1219, %v1218
        %v1342 = vpack.c.b16 %v1221, %v1220
        %v1343 = vpack.c.b16 %v1223, %v1222
        %v1344 = vpack.c.b16 %v1225, %v1224
        %v1345 = vpack.c.b16 %v1227, %v1226
        %v1346 = vpack.c.b16 %v1229, %v1228
        %v1347 = vpack.c.b16 %v1231, %v1230
        %v1348 = vpack.c.b16 %v1233, %v1232
        %v1349 = vpack.c.b16 %v1235, %v1234
        %v1350 = vpack.c.b16 %v1237, %v1236
        %v1351 = vpack.c.b16 %v1239, %v1238
        %v1352 = vpack.c.b16 %v1241, %v1240
        %v1353 = vpack.c.b16 %v1243, %v1242
        %v1354 = vpack.c.b16 %v1245, %v1244
        %v1355 = vpack.c.b16 %v1247, %v1246
        %v1356 = vpack.c.b16 %v1249, %v1248
        %v1357 = vpack.c.b16 %v1251, %v1250
        %v1358 = vpack.c.b16 %v1253, %v1252
        %v1359 = vpack.c.b16 %v1255, %v1254
        %v1360 = vpack.c.b16 %v1257, %v1256
        %v1361 = vpack.c.b16 %v1259, %v1258
        %v1362 = vpack.c.b16 %v1261, %v1260
        %v1363 = vpack.c.b16 %v1263, %v1262
        %v1364 = vpack.c.b16 %v1265, %v1264
        %v1365 = vpack.c.b16 %v1267, %v1266
        %v1366 = vpack.c.b16 %v1269, %v1268
        %v1367 = vpack.c.b16 %v1271, %v1270
        %v1368 = vpack.c.b16 %v1273, %v1272
        %v1369 = vpack.c.b16 %v1275, %v1274
        %v1370 = vpack.c.b16 %v1277, %v1276
        %v1371 = vpack.c.b16 %v1279, %v1278
        %v1372 = vpack.c.b16 %v1281, %v1280
        %v1373 = vpack.c.b16 %v1283, %v1282
        %v1374 = vpack.c.b16 %v1285, %v1284
        %v1375 = vpack.c.b16 %v1287, %v1286
        %v1376 = vpack.c.b16 %v1289, %v1288
        %v1377 = vpack.c.b16 %v1291, %v1290
        %v1378 = vpack.c.b16 %v1293, %v1292
        %v1379 = vpack.c.b16 %v1295, %v1294
        %v1380 = vpack.c.b16 %v1297, %v1296
        %v1381 = vpack.c.b16 %v1299, %v1298
        %v1382 = vpack.c.b16 %v1301, %v1300
        %v1383 = vpack.c.b16 %v1303, %v1302
        %v1384 = vpack.c.b16 %v1305, %v1304
        %v1385 = vpack.c.b16 %v1307, %v1306
        %v1386 = vpack.c.b16 %v1309, %v1308
        %v1387 = vpack.c.b16 %v1311, %v1310
        %v1388 = vpack.c.b16 %v1313, %v1312
        %v1389 = vpack.c.b16 %v1315, %v1314
        %v1390 = vpack.c.b16 %v1317, %v1316
        %v1391 = vpack.c.b16 %v1319, %v1318
        %v1392 = vpack.c.b16 %v1321, %v1320
        %v1393 = vpack.c.b16 %v1323, %v1322
        %v1394 = vpack.c.b16 %v1325, %v1324
        %v1395 = vpack.c.b16 %v1327, %v1326
        %v1396 = vpack.c.b16 %v1329, %v1328
        %v1397 = vpack.c.b16 %v1331, %v1330
        %v1398 = vpack.c.b16 %v1333, %v1332
        %v1399 = vpack.c.b16 %v1335, %v1334
        %1464 = vmatpush.bf16.msra.mxu0 %v1343
        %1465 = vmatpush.bf16.msra.mxu0 %v1342
        %1466 = vmatpush.bf16.msra.mxu0 %v1341
        %1467 = vmatpush.bf16.msra.mxu0 %v1340
        %1468 = vmatpush.bf16.msra.mxu0 %v1339
        %1469 = vmatpush.bf16.msra.mxu0 %v1338
        %1470 = vmatpush.bf16.msra.mxu0 %v1337
        %1471 = vmatpush.bf16.msra.mxu0 %v1336
        %1472 = vmatmul.bf16.gmra.mxu0 %v824
        %v1473 = vpop.f32.mrf.mxu0
        %v1474 = vadd.f32 0.0, %v1473
        %v1475 = vpop.f32.mrf.mxu0
        %v1476 = vadd.f32 0.0, %v1475
        %1477 = vmatmul.bf16.gmra.mxu0 %v832
        %v1478 = vpop.f32.mrf.mxu0
        %v1479 = vadd.f32 0.0, %v1478
        %v1480 = vpop.f32.mrf.mxu0
        %v1481 = vadd.f32 0.0, %v1480
        %1482 = vmatmul.bf16.gmra.mxu0 %v840
        %v1483 = vpop.f32.mrf.mxu0
        %v1484 = vadd.f32 0.0, %v1483
        %v1485 = vpop.f32.mrf.mxu0
        %v1486 = vadd.f32 0.0, %v1485
        %1487 = vmatmul.bf16.gmra.mxu0 %v848
        %v1488 = vpop.f32.mrf.mxu0
        %v1489 = vadd.f32 0.0, %v1488
        %v1490 = vpop.f32.mrf.mxu0
        %v1491 = vadd.f32 0.0, %v1490
        %1492 = vmatmul.bf16.gmra.mxu0 %v856
        %v1493 = vpop.f32.mrf.mxu0
        %v1494 = vadd.f32 0.0, %v1493
        %v1495 = vpop.f32.mrf.mxu0
        %v1496 = vadd.f32 0.0, %v1495
        %1497 = vmatmul.bf16.gmra.mxu0 %v864
        %v1498 = vpop.f32.mrf.mxu0
        %v1499 = vadd.f32 0.0, %v1498
        %v1500 = vpop.f32.mrf.mxu0
        %v1501 = vadd.f32 0.0, %v1500
        %1502 = vmatmul.bf16.gmra.mxu0 %v872
        %v1503 = vpop.f32.mrf.mxu0
        %v1504 = vadd.f32 0.0, %v1503
        %v1505 = vpop.f32.mrf.mxu0
        %v1506 = vadd.f32 0.0, %v1505
        %1507 = vmatmul.bf16.gmra.mxu0 %v880
        %v1508 = vpop.f32.mrf.mxu0
        %v1509 = vadd.f32 0.0, %v1508
        %v1510 = vpop.f32.mrf.mxu0
        %v1511 = vadd.f32 0.0, %v1510
        %1512 = vmatmul.bf16.gmra.mxu0 %v888
        %v1513 = vpop.f32.mrf.mxu0
        %v1514 = vadd.f32 0.0, %v1513
        %v1515 = vpop.f32.mrf.mxu0
        %v1516 = vadd.f32 0.0, %v1515
        %1517 = vmatmul.bf16.gmra.mxu0 %v896
        %v1518 = vpop.f32.mrf.mxu0
        %v1519 = vadd.f32 0.0, %v1518
        %v1520 = vpop.f32.mrf.mxu0
        %v1521 = vadd.f32 0.0, %v1520
        %1522 = vmatmul.bf16.gmra.mxu0 %v904
        %v1523 = vpop.f32.mrf.mxu0
        %v1524 = vadd.f32 0.0, %v1523
        %v1525 = vpop.f32.mrf.mxu0
        %v1526 = vadd.f32 0.0, %v1525
        %1527 = vmatmul.bf16.gmra.mxu0 %v912
        %v1528 = vpop.f32.mrf.mxu0
        %v1529 = vadd.f32 0.0, %v1528
        %v1530 = vpop.f32.mrf.mxu0
        %v1531 = vadd.f32 0.0, %v1530
        %1532 = vmatmul.bf16.gmra.mxu0 %v920
        %v1533 = vpop.f32.mrf.mxu0
        %v1534 = vadd.f32 0.0, %v1533
        %v1535 = vpop.f32.mrf.mxu0
        %v1536 = vadd.f32 0.0, %v1535
        %1537 = vmatmul.bf16.gmra.mxu0 %v928
        %v1538 = vpop.f32.mrf.mxu0
        %v1539 = vadd.f32 0.0, %v1538
        %v1540 = vpop.f32.mrf.mxu0
        %v1541 = vadd.f32 0.0, %v1540
        %1542 = vmatmul.bf16.gmra.mxu0 %v936
        %v1543 = vpop.f32.mrf.mxu0
        %v1544 = vadd.f32 0.0, %v1543
        %v1545 = vpop.f32.mrf.mxu0
        %v1546 = vadd.f32 0.0, %v1545
        %1547 = vmatmul.bf16.gmra.mxu0 %v944
        %v1548 = vpop.f32.mrf.mxu0
        %v1549 = vadd.f32 0.0, %v1548
        %v1550 = vpop.f32.mrf.mxu0
        %v1551 = vadd.f32 0.0, %v1550
        %1552 = vdwg.mxu0
        %1553 = vmatpush.bf16.msra.mxu0 %v1351
        %1554 = vmatpush.bf16.msra.mxu0 %v1350
        %1555 = vmatpush.bf16.msra.mxu0 %v1349
        %1556 = vmatpush.bf16.msra.mxu0 %v1348
        %1557 = vmatpush.bf16.msra.mxu0 %v1347
        %1558 = vmatpush.bf16.msra.mxu0 %v1346
        %1559 = vmatpush.bf16.msra.mxu0 %v1345
        %1560 = vmatpush.bf16.msra.mxu0 %v1344
        %1561 = vmatmul.bf16.gmra.mxu0 %v825
        %v1562 = vpop.f32.mrf.mxu0
        %v1563 = vadd.f32 %v1474, %v1562
        %v1564 = vpop.f32.mrf.mxu0
        %v1565 = vadd.f32 %v1476, %v1564
        %1566 = vmatmul.bf16.gmra.mxu0 %v833
        %v1567 = vpop.f32.mrf.mxu0
        %v1568 = vadd.f32 %v1479, %v1567
        %v1569 = vpop.f32.mrf.mxu0
        %v1570 = vadd.f32 %v1481, %v1569
        %1571 = vmatmul.bf16.gmra.mxu0 %v841
        %v1572 = vpop.f32.mrf.mxu0
        %v1573 = vadd.f32 %v1484, %v1572
        %v1574 = vpop.f32.mrf.mxu0
        %v1575 = vadd.f32 %v1486, %v1574
        %1576 = vmatmul.bf16.gmra.mxu0 %v849
        %v1577 = vpop.f32.mrf.mxu0
        %v1578 = vadd.f32 %v1489, %v1577
        %v1579 = vpop.f32.mrf.mxu0
        %v1580 = vadd.f32 %v1491, %v1579
        %1581 = vmatmul.bf16.gmra.mxu0 %v857
        %v1582 = vpop.f32.mrf.mxu0
        %v1583 = vadd.f32 %v1494, %v1582
        %v1584 = vpop.f32.mrf.mxu0
        %v1585 = vadd.f32 %v1496, %v1584
        %1586 = vmatmul.bf16.gmra.mxu0 %v865
        %v1587 = vpop.f32.mrf.mxu0
        %v1588 = vadd.f32 %v1499, %v1587
        %v1589 = vpop.f32.mrf.mxu0
        %v1590 = vadd.f32 %v1501, %v1589
        %1591 = vmatmul.bf16.gmra.mxu0 %v873
        %v1592 = vpop.f32.mrf.mxu0
        %v1593 = vadd.f32 %v1504, %v1592
        %v1594 = vpop.f32.mrf.mxu0
        %v1595 = vadd.f32 %v1506, %v1594
        %1596 = vmatmul.bf16.gmra.mxu0 %v881
        %v1597 = vpop.f32.mrf.mxu0
        %v1598 = vadd.f32 %v1509, %v1597
        %v1599 = vpop.f32.mrf.mxu0
        %v1600 = vadd.f32 %v1511, %v1599
        %1601 = vmatmul.bf16.gmra.mxu0 %v889
        %v1602 = vpop.f32.mrf.mxu0
        %v1603 = vadd.f32 %v1514, %v1602
        %v1604 = vpop.f32.mrf.mxu0
        %v1605 = vadd.f32 %v1516, %v1604
        %1606 = vmatmul.bf16.gmra.mxu0 %v897
        %v1607 = vpop.f32.mrf.mxu0
        %v1608 = vadd.f32 %v1519, %v1607
        %v1609 = vpop.f32.mrf.mxu0
        %v1610 = vadd.f32 %v1521, %v1609
        %1611 = vmatmul.bf16.gmra.mxu0 %v905
        %v1612 = vpop.f32.mrf.mxu0
        %v1613 = vadd.f32 %v1524, %v1612
        %v1614 = vpop.f32.mrf.mxu0
        %v1615 = vadd.f32 %v1526, %v1614
        %1616 = vmatmul.bf16.gmra.mxu0 %v913
        %v1617 = vpop.f32.mrf.mxu0
        %v1618 = vadd.f32 %v1529, %v1617
        %v1619 = vpop.f32.mrf.mxu0
        %v1620 = vadd.f32 %v1531, %v1619
        %1621 = vmatmul.bf16.gmra.mxu0 %v921
        %v1622 = vpop.f32.mrf.mxu0
        %v1623 = vadd.f32 %v1534, %v1622
        %v1624 = vpop.f32.mrf.mxu0
        %v1625 = vadd.f32 %v1536, %v1624
        %1626 = vmatmul.bf16.gmra.mxu0 %v929
        %v1627 = vpop.f32.mrf.mxu0
        %v1628 = vadd.f32 %v1539, %v1627
        %v1629 = vpop.f32.mrf.mxu0
        %v1630 = vadd.f32 %v1541, %v1629
        %1631 = vmatmul.bf16.gmra.mxu0 %v937
        %v1632 = vpop.f32.mrf.mxu0
        %v1633 = vadd.f32 %v1544, %v1632
        %v1634 = vpop.f32.mrf.mxu0
        %v1635 = vadd.f32 %v1546, %v1634
        %1636 = vmatmul.bf16.gmra.mxu0 %v945
        %v1637 = vpop.f32.mrf.mxu0
        %v1638 = vadd.f32 %v1549, %v1637
        %v1639 = vpop.f32.mrf.mxu0
        %v1640 = vadd.f32 %v1551, %v1639
        %1641 = vdwg.mxu0
        %1642 = vmatpush.bf16.msra.mxu0 %v1359
        %1643 = vmatpush.bf16.msra.mxu0 %v1358
        %1644 = vmatpush.bf16.msra.mxu0 %v1357
        %1645 = vmatpush.bf16.msra.mxu0 %v1356
        %1646 = vmatpush.bf16.msra.mxu0 %v1355
        %1647 = vmatpush.bf16.msra.mxu0 %v1354
        %1648 = vmatpush.bf16.msra.mxu0 %v1353
        %1649 = vmatpush.bf16.msra.mxu0 %v1352
        %1650 = vmatmul.bf16.gmra.mxu0 %v826
        %v1651 = vpop.f32.mrf.mxu0
        %v1652 = vadd.f32 %v1563, %v1651
        %v1653 = vpop.f32.mrf.mxu0
        %v1654 = vadd.f32 %v1565, %v1653
        %1655 = vmatmul.bf16.gmra.mxu0 %v834
        %v1656 = vpop.f32.mrf.mxu0
        %v1657 = vadd.f32 %v1568, %v1656
        %v1658 = vpop.f32.mrf.mxu0
        %v1659 = vadd.f32 %v1570, %v1658
        %1660 = vmatmul.bf16.gmra.mxu0 %v842
        %v1661 = vpop.f32.mrf.mxu0
        %v1662 = vadd.f32 %v1573, %v1661
        %v1663 = vpop.f32.mrf.mxu0
        %v1664 = vadd.f32 %v1575, %v1663
        %1665 = vmatmul.bf16.gmra.mxu0 %v850
        %v1666 = vpop.f32.mrf.mxu0
        %v1667 = vadd.f32 %v1578, %v1666
        %v1668 = vpop.f32.mrf.mxu0
        %v1669 = vadd.f32 %v1580, %v1668
        %1670 = vmatmul.bf16.gmra.mxu0 %v858
        %v1671 = vpop.f32.mrf.mxu0
        %v1672 = vadd.f32 %v1583, %v1671
        %v1673 = vpop.f32.mrf.mxu0
        %v1674 = vadd.f32 %v1585, %v1673
        %1675 = vmatmul.bf16.gmra.mxu0 %v866
        %v1676 = vpop.f32.mrf.mxu0
        %v1677 = vadd.f32 %v1588, %v1676
        %v1678 = vpop.f32.mrf.mxu0
        %v1679 = vadd.f32 %v1590, %v1678
        %1680 = vmatmul.bf16.gmra.mxu0 %v874
        %v1681 = vpop.f32.mrf.mxu0
        %v1682 = vadd.f32 %v1593, %v1681
        %v1683 = vpop.f32.mrf.mxu0
        %v1684 = vadd.f32 %v1595, %v1683
        %1685 = vmatmul.bf16.gmra.mxu0 %v882
        %v1686 = vpop.f32.mrf.mxu0
        %v1687 = vadd.f32 %v1598, %v1686
        %v1688 = vpop.f32.mrf.mxu0
        %v1689 = vadd.f32 %v1600, %v1688
        %1690 = vmatmul.bf16.gmra.mxu0 %v890
        %v1691 = vpop.f32.mrf.mxu0
        %v1692 = vadd.f32 %v1603, %v1691
        %v1693 = vpop.f32.mrf.mxu0
        %v1694 = vadd.f32 %v1605, %v1693
        %1695 = vmatmul.bf16.gmra.mxu0 %v898
        %v1696 = vpop.f32.mrf.mxu0
        %v1697 = vadd.f32 %v1608, %v1696
        %v1698 = vpop.f32.mrf.mxu0
        %v1699 = vadd.f32 %v1610, %v1698
        %1700 = vmatmul.bf16.gmra.mxu0 %v906
        %v1701 = vpop.f32.mrf.mxu0
        %v1702 = vadd.f32 %v1613, %v1701
        %v1703 = vpop.f32.mrf.mxu0
        %v1704 = vadd.f32 %v1615, %v1703
        %1705 = vmatmul.bf16.gmra.mxu0 %v914
        %v1706 = vpop.f32.mrf.mxu0
        %v1707 = vadd.f32 %v1618, %v1706
        %v1708 = vpop.f32.mrf.mxu0
        %v1709 = vadd.f32 %v1620, %v1708
        %1710 = vmatmul.bf16.gmra.mxu0 %v922
        %v1711 = vpop.f32.mrf.mxu0
        %v1712 = vadd.f32 %v1623, %v1711
        %v1713 = vpop.f32.mrf.mxu0
        %v1714 = vadd.f32 %v1625, %v1713
        %1715 = vmatmul.bf16.gmra.mxu0 %v930
        %v1716 = vpop.f32.mrf.mxu0
        %v1717 = vadd.f32 %v1628, %v1716
        %v1718 = vpop.f32.mrf.mxu0
        %v1719 = vadd.f32 %v1630, %v1718
        %1720 = vmatmul.bf16.gmra.mxu0 %v938
        %v1721 = vpop.f32.mrf.mxu0
        %v1722 = vadd.f32 %v1633, %v1721
        %v1723 = vpop.f32.mrf.mxu0
        %v1724 = vadd.f32 %v1635, %v1723
        %1725 = vmatmul.bf16.gmra.mxu0 %v946
        %v1726 = vpop.f32.mrf.mxu0
        %v1727 = vadd.f32 %v1638, %v1726
        %v1728 = vpop.f32.mrf.mxu0
        %v1729 = vadd.f32 %v1640, %v1728
        %1730 = vdwg.mxu0
        %1731 = vmatpush.bf16.msra.mxu0 %v1367
        %1732 = vmatpush.bf16.msra.mxu0 %v1366
        %1733 = vmatpush.bf16.msra.mxu0 %v1365
        %1734 = vmatpush.bf16.msra.mxu0 %v1364
        %1735 = vmatpush.bf16.msra.mxu0 %v1363
        %1736 = vmatpush.bf16.msra.mxu0 %v1362
        %1737 = vmatpush.bf16.msra.mxu0 %v1361
        %1738 = vmatpush.bf16.msra.mxu0 %v1360
        %1739 = vmatmul.bf16.gmra.mxu0 %v827
        %v1740 = vpop.f32.mrf.mxu0
        %v1741 = vadd.f32 %v1652, %v1740
        %v1742 = vpop.f32.mrf.mxu0
        %v1743 = vadd.f32 %v1654, %v1742
        %1744 = vmatmul.bf16.gmra.mxu0 %v835
        %v1745 = vpop.f32.mrf.mxu0
        %v1746 = vadd.f32 %v1657, %v1745
        %v1747 = vpop.f32.mrf.mxu0
        %v1748 = vadd.f32 %v1659, %v1747
        %1749 = vmatmul.bf16.gmra.mxu0 %v843
        %v1750 = vpop.f32.mrf.mxu0
        %v1751 = vadd.f32 %v1662, %v1750
        %v1752 = vpop.f32.mrf.mxu0
        %v1753 = vadd.f32 %v1664, %v1752
        %1754 = vmatmul.bf16.gmra.mxu0 %v851
        %v1755 = vpop.f32.mrf.mxu0
        %v1756 = vadd.f32 %v1667, %v1755
        %v1757 = vpop.f32.mrf.mxu0
        %v1758 = vadd.f32 %v1669, %v1757
        %1759 = vmatmul.bf16.gmra.mxu0 %v859
        %v1760 = vpop.f32.mrf.mxu0
        %v1761 = vadd.f32 %v1672, %v1760
        %v1762 = vpop.f32.mrf.mxu0
        %v1763 = vadd.f32 %v1674, %v1762
        %1764 = vmatmul.bf16.gmra.mxu0 %v867
        %v1765 = vpop.f32.mrf.mxu0
        %v1766 = vadd.f32 %v1677, %v1765
        %v1767 = vpop.f32.mrf.mxu0
        %v1768 = vadd.f32 %v1679, %v1767
        %1769 = vmatmul.bf16.gmra.mxu0 %v875
        %v1770 = vpop.f32.mrf.mxu0
        %v1771 = vadd.f32 %v1682, %v1770
        %v1772 = vpop.f32.mrf.mxu0
        %v1773 = vadd.f32 %v1684, %v1772
        %1774 = vmatmul.bf16.gmra.mxu0 %v883
        %v1775 = vpop.f32.mrf.mxu0
        %v1776 = vadd.f32 %v1687, %v1775
        %v1777 = vpop.f32.mrf.mxu0
        %v1778 = vadd.f32 %v1689, %v1777
        %1779 = vmatmul.bf16.gmra.mxu0 %v891
        %v1780 = vpop.f32.mrf.mxu0
        %v1781 = vadd.f32 %v1692, %v1780
        %v1782 = vpop.f32.mrf.mxu0
        %v1783 = vadd.f32 %v1694, %v1782
        %1784 = vmatmul.bf16.gmra.mxu0 %v899
        %v1785 = vpop.f32.mrf.mxu0
        %v1786 = vadd.f32 %v1697, %v1785
        %v1787 = vpop.f32.mrf.mxu0
        %v1788 = vadd.f32 %v1699, %v1787
        %1789 = vmatmul.bf16.gmra.mxu0 %v907
        %v1790 = vpop.f32.mrf.mxu0
        %v1791 = vadd.f32 %v1702, %v1790
        %v1792 = vpop.f32.mrf.mxu0
        %v1793 = vadd.f32 %v1704, %v1792
        %1794 = vmatmul.bf16.gmra.mxu0 %v915
        %v1795 = vpop.f32.mrf.mxu0
        %v1796 = vadd.f32 %v1707, %v1795
        %v1797 = vpop.f32.mrf.mxu0
        %v1798 = vadd.f32 %v1709, %v1797
        %1799 = vmatmul.bf16.gmra.mxu0 %v923
        %v1800 = vpop.f32.mrf.mxu0
        %v1801 = vadd.f32 %v1712, %v1800
        %v1802 = vpop.f32.mrf.mxu0
        %v1803 = vadd.f32 %v1714, %v1802
        %1804 = vmatmul.bf16.gmra.mxu0 %v931
        %v1805 = vpop.f32.mrf.mxu0
        %v1806 = vadd.f32 %v1717, %v1805
        %v1807 = vpop.f32.mrf.mxu0
        %v1808 = vadd.f32 %v1719, %v1807
        %1809 = vmatmul.bf16.gmra.mxu0 %v939
        %v1810 = vpop.f32.mrf.mxu0
        %v1811 = vadd.f32 %v1722, %v1810
        %v1812 = vpop.f32.mrf.mxu0
        %v1813 = vadd.f32 %v1724, %v1812
        %1814 = vmatmul.bf16.gmra.mxu0 %v947
        %v1815 = vpop.f32.mrf.mxu0
        %v1816 = vadd.f32 %v1727, %v1815
        %v1817 = vpop.f32.mrf.mxu0
        %v1818 = vadd.f32 %v1729, %v1817
        %1819 = vdwg.mxu0
        %1820 = vmatpush.bf16.msra.mxu0 %v1375
        %1821 = vmatpush.bf16.msra.mxu0 %v1374
        %1822 = vmatpush.bf16.msra.mxu0 %v1373
        %1823 = vmatpush.bf16.msra.mxu0 %v1372
        %1824 = vmatpush.bf16.msra.mxu0 %v1371
        %1825 = vmatpush.bf16.msra.mxu0 %v1370
        %1826 = vmatpush.bf16.msra.mxu0 %v1369
        %1827 = vmatpush.bf16.msra.mxu0 %v1368
        %1828 = vmatmul.bf16.gmra.mxu0 %v828
        %v1829 = vpop.f32.mrf.mxu0
        %v1830 = vadd.f32 %v1741, %v1829
        %v1831 = vpop.f32.mrf.mxu0
        %v1832 = vadd.f32 %v1743, %v1831
        %1833 = vmatmul.bf16.gmra.mxu0 %v836
        %v1834 = vpop.f32.mrf.mxu0
        %v1835 = vadd.f32 %v1746, %v1834
        %v1836 = vpop.f32.mrf.mxu0
        %v1837 = vadd.f32 %v1748, %v1836
        %1838 = vmatmul.bf16.gmra.mxu0 %v844
        %v1839 = vpop.f32.mrf.mxu0
        %v1840 = vadd.f32 %v1751, %v1839
        %v1841 = vpop.f32.mrf.mxu0
        %v1842 = vadd.f32 %v1753, %v1841
        %1843 = vmatmul.bf16.gmra.mxu0 %v852
        %v1844 = vpop.f32.mrf.mxu0
        %v1845 = vadd.f32 %v1756, %v1844
        %v1846 = vpop.f32.mrf.mxu0
        %v1847 = vadd.f32 %v1758, %v1846
        %1848 = vmatmul.bf16.gmra.mxu0 %v860
        %v1849 = vpop.f32.mrf.mxu0
        %v1850 = vadd.f32 %v1761, %v1849
        %v1851 = vpop.f32.mrf.mxu0
        %v1852 = vadd.f32 %v1763, %v1851
        %1853 = vmatmul.bf16.gmra.mxu0 %v868
        %v1854 = vpop.f32.mrf.mxu0
        %v1855 = vadd.f32 %v1766, %v1854
        %v1856 = vpop.f32.mrf.mxu0
        %v1857 = vadd.f32 %v1768, %v1856
        %1858 = vmatmul.bf16.gmra.mxu0 %v876
        %v1859 = vpop.f32.mrf.mxu0
        %v1860 = vadd.f32 %v1771, %v1859
        %v1861 = vpop.f32.mrf.mxu0
        %v1862 = vadd.f32 %v1773, %v1861
        %1863 = vmatmul.bf16.gmra.mxu0 %v884
        %v1864 = vpop.f32.mrf.mxu0
        %v1865 = vadd.f32 %v1776, %v1864
        %v1866 = vpop.f32.mrf.mxu0
        %v1867 = vadd.f32 %v1778, %v1866
        %1868 = vmatmul.bf16.gmra.mxu0 %v892
        %v1869 = vpop.f32.mrf.mxu0
        %v1870 = vadd.f32 %v1781, %v1869
        %v1871 = vpop.f32.mrf.mxu0
        %v1872 = vadd.f32 %v1783, %v1871
        %1873 = vmatmul.bf16.gmra.mxu0 %v900
        %v1874 = vpop.f32.mrf.mxu0
        %v1875 = vadd.f32 %v1786, %v1874
        %v1876 = vpop.f32.mrf.mxu0
        %v1877 = vadd.f32 %v1788, %v1876
        %1878 = vmatmul.bf16.gmra.mxu0 %v908
        %v1879 = vpop.f32.mrf.mxu0
        %v1880 = vadd.f32 %v1791, %v1879
        %v1881 = vpop.f32.mrf.mxu0
        %v1882 = vadd.f32 %v1793, %v1881
        %1883 = vmatmul.bf16.gmra.mxu0 %v916
        %v1884 = vpop.f32.mrf.mxu0
        %v1885 = vadd.f32 %v1796, %v1884
        %v1886 = vpop.f32.mrf.mxu0
        %v1887 = vadd.f32 %v1798, %v1886
        %1888 = vmatmul.bf16.gmra.mxu0 %v924
        %v1889 = vpop.f32.mrf.mxu0
        %v1890 = vadd.f32 %v1801, %v1889
        %v1891 = vpop.f32.mrf.mxu0
        %v1892 = vadd.f32 %v1803, %v1891
        %1893 = vmatmul.bf16.gmra.mxu0 %v932
        %v1894 = vpop.f32.mrf.mxu0
        %v1895 = vadd.f32 %v1806, %v1894
        %v1896 = vpop.f32.mrf.mxu0
        %v1897 = vadd.f32 %v1808, %v1896
        %1898 = vmatmul.bf16.gmra.mxu0 %v940
        %v1899 = vpop.f32.mrf.mxu0
        %v1900 = vadd.f32 %v1811, %v1899
        %v1901 = vpop.f32.mrf.mxu0
        %v1902 = vadd.f32 %v1813, %v1901
        %1903 = vmatmul.bf16.gmra.mxu0 %v948
        %v1904 = vpop.f32.mrf.mxu0
        %v1905 = vadd.f32 %v1816, %v1904
        %v1906 = vpop.f32.mrf.mxu0
        %v1907 = vadd.f32 %v1818, %v1906
        %1908 = vdwg.mxu0
        %1909 = vmatpush.bf16.msra.mxu0 %v1383
        %1910 = vmatpush.bf16.msra.mxu0 %v1382
        %1911 = vmatpush.bf16.msra.mxu0 %v1381
        %1912 = vmatpush.bf16.msra.mxu0 %v1380
        %1913 = vmatpush.bf16.msra.mxu0 %v1379
        %1914 = vmatpush.bf16.msra.mxu0 %v1378
        %1915 = vmatpush.bf16.msra.mxu0 %v1377
        %1916 = vmatpush.bf16.msra.mxu0 %v1376
        %1917 = vmatmul.bf16.gmra.mxu0 %v829
        %v1918 = vpop.f32.mrf.mxu0
        %v1919 = vadd.f32 %v1830, %v1918
        %v1920 = vpop.f32.mrf.mxu0
        %v1921 = vadd.f32 %v1832, %v1920
        %1922 = vmatmul.bf16.gmra.mxu0 %v837
        %v1923 = vpop.f32.mrf.mxu0
        %v1924 = vadd.f32 %v1835, %v1923
        %v1925 = vpop.f32.mrf.mxu0
        %v1926 = vadd.f32 %v1837, %v1925
        %1927 = vmatmul.bf16.gmra.mxu0 %v845
        %v1928 = vpop.f32.mrf.mxu0
        %v1929 = vadd.f32 %v1840, %v1928
        %v1930 = vpop.f32.mrf.mxu0
        %v1931 = vadd.f32 %v1842, %v1930
        %1932 = vmatmul.bf16.gmra.mxu0 %v853
        %v1933 = vpop.f32.mrf.mxu0
        %v1934 = vadd.f32 %v1845, %v1933
        %v1935 = vpop.f32.mrf.mxu0
        %v1936 = vadd.f32 %v1847, %v1935
        %1937 = vmatmul.bf16.gmra.mxu0 %v861
        %v1938 = vpop.f32.mrf.mxu0
        %v1939 = vadd.f32 %v1850, %v1938
        %v1940 = vpop.f32.mrf.mxu0
        %v1941 = vadd.f32 %v1852, %v1940
        %1942 = vmatmul.bf16.gmra.mxu0 %v869
        %v1943 = vpop.f32.mrf.mxu0
        %v1944 = vadd.f32 %v1855, %v1943
        %v1945 = vpop.f32.mrf.mxu0
        %v1946 = vadd.f32 %v1857, %v1945
        %1947 = vmatmul.bf16.gmra.mxu0 %v877
        %v1948 = vpop.f32.mrf.mxu0
        %v1949 = vadd.f32 %v1860, %v1948
        %v1950 = vpop.f32.mrf.mxu0
        %v1951 = vadd.f32 %v1862, %v1950
        %1952 = vmatmul.bf16.gmra.mxu0 %v885
        %v1953 = vpop.f32.mrf.mxu0
        %v1954 = vadd.f32 %v1865, %v1953
        %v1955 = vpop.f32.mrf.mxu0
        %v1956 = vadd.f32 %v1867, %v1955
        %1957 = vmatmul.bf16.gmra.mxu0 %v893
        %v1958 = vpop.f32.mrf.mxu0
        %v1959 = vadd.f32 %v1870, %v1958
        %v1960 = vpop.f32.mrf.mxu0
        %v1961 = vadd.f32 %v1872, %v1960
        %1962 = vmatmul.bf16.gmra.mxu0 %v901
        %v1963 = vpop.f32.mrf.mxu0
        %v1964 = vadd.f32 %v1875, %v1963
        %v1965 = vpop.f32.mrf.mxu0
        %v1966 = vadd.f32 %v1877, %v1965
        %1967 = vmatmul.bf16.gmra.mxu0 %v909
        %v1968 = vpop.f32.mrf.mxu0
        %v1969 = vadd.f32 %v1880, %v1968
        %v1970 = vpop.f32.mrf.mxu0
        %v1971 = vadd.f32 %v1882, %v1970
        %1972 = vmatmul.bf16.gmra.mxu0 %v917
        %v1973 = vpop.f32.mrf.mxu0
        %v1974 = vadd.f32 %v1885, %v1973
        %v1975 = vpop.f32.mrf.mxu0
        %v1976 = vadd.f32 %v1887, %v1975
        %1977 = vmatmul.bf16.gmra.mxu0 %v925
        %v1978 = vpop.f32.mrf.mxu0
        %v1979 = vadd.f32 %v1890, %v1978
        %v1980 = vpop.f32.mrf.mxu0
        %v1981 = vadd.f32 %v1892, %v1980
        %1982 = vmatmul.bf16.gmra.mxu0 %v933
        %v1983 = vpop.f32.mrf.mxu0
        %v1984 = vadd.f32 %v1895, %v1983
        %v1985 = vpop.f32.mrf.mxu0
        %v1986 = vadd.f32 %v1897, %v1985
        %1987 = vmatmul.bf16.gmra.mxu0 %v941
        %v1988 = vpop.f32.mrf.mxu0
        %v1989 = vadd.f32 %v1900, %v1988
        %v1990 = vpop.f32.mrf.mxu0
        %v1991 = vadd.f32 %v1902, %v1990
        %1992 = vmatmul.bf16.gmra.mxu0 %v949
        %v1993 = vpop.f32.mrf.mxu0
        %v1994 = vadd.f32 %v1905, %v1993
        %v1995 = vpop.f32.mrf.mxu0
        %v1996 = vadd.f32 %v1907, %v1995
        %1997 = vdwg.mxu0
        %1998 = vmatpush.bf16.msra.mxu0 %v1391
        %1999 = vmatpush.bf16.msra.mxu0 %v1390
        %2000 = vmatpush.bf16.msra.mxu0 %v1389
        %2001 = vmatpush.bf16.msra.mxu0 %v1388
        %2002 = vmatpush.bf16.msra.mxu0 %v1387
        %2003 = vmatpush.bf16.msra.mxu0 %v1386
        %2004 = vmatpush.bf16.msra.mxu0 %v1385
        %2005 = vmatpush.bf16.msra.mxu0 %v1384
        %2006 = vmatmul.bf16.gmra.mxu0 %v830
        %v2007 = vpop.f32.mrf.mxu0
        %v2008 = vadd.f32 %v1919, %v2007
        %v2009 = vpop.f32.mrf.mxu0
        %v2010 = vadd.f32 %v1921, %v2009
        %2011 = vmatmul.bf16.gmra.mxu0 %v838
        %v2012 = vpop.f32.mrf.mxu0
        %v2013 = vadd.f32 %v1924, %v2012
        %v2014 = vpop.f32.mrf.mxu0
        %v2015 = vadd.f32 %v1926, %v2014
        %2016 = vmatmul.bf16.gmra.mxu0 %v846
        %v2017 = vpop.f32.mrf.mxu0
        %v2018 = vadd.f32 %v1929, %v2017
        %v2019 = vpop.f32.mrf.mxu0
        %v2020 = vadd.f32 %v1931, %v2019
        %2021 = vmatmul.bf16.gmra.mxu0 %v854
        %v2022 = vpop.f32.mrf.mxu0
        %v2023 = vadd.f32 %v1934, %v2022
        %v2024 = vpop.f32.mrf.mxu0
        %v2025 = vadd.f32 %v1936, %v2024
        %2026 = vmatmul.bf16.gmra.mxu0 %v862
        %v2027 = vpop.f32.mrf.mxu0
        %v2028 = vadd.f32 %v1939, %v2027
        %v2029 = vpop.f32.mrf.mxu0
        %v2030 = vadd.f32 %v1941, %v2029
        %2031 = vmatmul.bf16.gmra.mxu0 %v870
        %v2032 = vpop.f32.mrf.mxu0
        %v2033 = vadd.f32 %v1944, %v2032
        %v2034 = vpop.f32.mrf.mxu0
        %v2035 = vadd.f32 %v1946, %v2034
        %2036 = vmatmul.bf16.gmra.mxu0 %v878
        %v2037 = vpop.f32.mrf.mxu0
        %v2038 = vadd.f32 %v1949, %v2037
        %v2039 = vpop.f32.mrf.mxu0
        %v2040 = vadd.f32 %v1951, %v2039
        %2041 = vmatmul.bf16.gmra.mxu0 %v886
        %v2042 = vpop.f32.mrf.mxu0
        %v2043 = vadd.f32 %v1954, %v2042
        %v2044 = vpop.f32.mrf.mxu0
        %v2045 = vadd.f32 %v1956, %v2044
        %2046 = vmatmul.bf16.gmra.mxu0 %v894
        %v2047 = vpop.f32.mrf.mxu0
        %v2048 = vadd.f32 %v1959, %v2047
        %v2049 = vpop.f32.mrf.mxu0
        %v2050 = vadd.f32 %v1961, %v2049
        %2051 = vmatmul.bf16.gmra.mxu0 %v902
        %v2052 = vpop.f32.mrf.mxu0
        %v2053 = vadd.f32 %v1964, %v2052
        %v2054 = vpop.f32.mrf.mxu0
        %v2055 = vadd.f32 %v1966, %v2054
        %2056 = vmatmul.bf16.gmra.mxu0 %v910
        %v2057 = vpop.f32.mrf.mxu0
        %v2058 = vadd.f32 %v1969, %v2057
        %v2059 = vpop.f32.mrf.mxu0
        %v2060 = vadd.f32 %v1971, %v2059
        %2061 = vmatmul.bf16.gmra.mxu0 %v918
        %v2062 = vpop.f32.mrf.mxu0
        %v2063 = vadd.f32 %v1974, %v2062
        %v2064 = vpop.f32.mrf.mxu0
        %v2065 = vadd.f32 %v1976, %v2064
        %2066 = vmatmul.bf16.gmra.mxu0 %v926
        %v2067 = vpop.f32.mrf.mxu0
        %v2068 = vadd.f32 %v1979, %v2067
        %v2069 = vpop.f32.mrf.mxu0
        %v2070 = vadd.f32 %v1981, %v2069
        %2071 = vmatmul.bf16.gmra.mxu0 %v934
        %v2072 = vpop.f32.mrf.mxu0
        %v2073 = vadd.f32 %v1984, %v2072
        %v2074 = vpop.f32.mrf.mxu0
        %v2075 = vadd.f32 %v1986, %v2074
        %2076 = vmatmul.bf16.gmra.mxu0 %v942
        %v2077 = vpop.f32.mrf.mxu0
        %v2078 = vadd.f32 %v1989, %v2077
        %v2079 = vpop.f32.mrf.mxu0
        %v2080 = vadd.f32 %v1991, %v2079
        %2081 = vmatmul.bf16.gmra.mxu0 %v950
        %v2082 = vpop.f32.mrf.mxu0
        %v2083 = vadd.f32 %v1994, %v2082
        %v2084 = vpop.f32.mrf.mxu0
        %v2085 = vadd.f32 %v1996, %v2084
        %2086 = vdwg.mxu0
        %2087 = vmatpush.bf16.msra.mxu0 %v1399
        %2088 = vmatpush.bf16.msra.mxu0 %v1398
        %2089 = vmatpush.bf16.msra.mxu0 %v1397
        %2090 = vmatpush.bf16.msra.mxu0 %v1396
        %2091 = vmatpush.bf16.msra.mxu0 %v1395
        %2092 = vmatpush.bf16.msra.mxu0 %v1394
        %2093 = vmatpush.bf16.msra.mxu0 %v1393
        %2094 = vmatpush.bf16.msra.mxu0 %v1392
        %2095 = vmatmul.bf16.gmra.mxu0 %v831
        %v2096 = vpop.f32.mrf.mxu0
        %v2097 = vadd.f32 %v2008, %v2096
        %v2098 = vpop.f32.mrf.mxu0
        %v2099 = vadd.f32 %v2010, %v2098
        %2100 = vmatmul.bf16.gmra.mxu0 %v839
        %v2101 = vpop.f32.mrf.mxu0
        %v2102 = vadd.f32 %v2013, %v2101
        %v2103 = vpop.f32.mrf.mxu0
        %v2104 = vadd.f32 %v2015, %v2103
        %2105 = vmatmul.bf16.gmra.mxu0 %v847
        %v2106 = vpop.f32.mrf.mxu0
        %v2107 = vadd.f32 %v2018, %v2106
        %v2108 = vpop.f32.mrf.mxu0
        %v2109 = vadd.f32 %v2020, %v2108
        %2110 = vmatmul.bf16.gmra.mxu0 %v855
        %v2111 = vpop.f32.mrf.mxu0
        %v2112 = vadd.f32 %v2023, %v2111
        %v2113 = vpop.f32.mrf.mxu0
        %v2114 = vadd.f32 %v2025, %v2113
        %2115 = vmatmul.bf16.gmra.mxu0 %v863
        %v2116 = vpop.f32.mrf.mxu0
        %v2117 = vadd.f32 %v2028, %v2116
        %v2118 = vpop.f32.mrf.mxu0
        %v2119 = vadd.f32 %v2030, %v2118
        %2120 = vmatmul.bf16.gmra.mxu0 %v871
        %v2121 = vpop.f32.mrf.mxu0
        %v2122 = vadd.f32 %v2033, %v2121
        %v2123 = vpop.f32.mrf.mxu0
        %v2124 = vadd.f32 %v2035, %v2123
        %2125 = vmatmul.bf16.gmra.mxu0 %v879
        %v2126 = vpop.f32.mrf.mxu0
        %v2127 = vadd.f32 %v2038, %v2126
        %v2128 = vpop.f32.mrf.mxu0
        %v2129 = vadd.f32 %v2040, %v2128
        %2130 = vmatmul.bf16.gmra.mxu0 %v887
        %v2131 = vpop.f32.mrf.mxu0
        %v2132 = vadd.f32 %v2043, %v2131
        %v2133 = vpop.f32.mrf.mxu0
        %v2134 = vadd.f32 %v2045, %v2133
        %2135 = vmatmul.bf16.gmra.mxu0 %v895
        %v2136 = vpop.f32.mrf.mxu0
        %v2137 = vadd.f32 %v2048, %v2136
        %v2138 = vpop.f32.mrf.mxu0
        %v2139 = vadd.f32 %v2050, %v2138
        %2140 = vmatmul.bf16.gmra.mxu0 %v903
        %v2141 = vpop.f32.mrf.mxu0
        %v2142 = vadd.f32 %v2053, %v2141
        %v2143 = vpop.f32.mrf.mxu0
        %v2144 = vadd.f32 %v2055, %v2143
        %2145 = vmatmul.bf16.gmra.mxu0 %v911
        %v2146 = vpop.f32.mrf.mxu0
        %v2147 = vadd.f32 %v2058, %v2146
        %v2148 = vpop.f32.mrf.mxu0
        %v2149 = vadd.f32 %v2060, %v2148
        %2150 = vmatmul.bf16.gmra.mxu0 %v919
        %v2151 = vpop.f32.mrf.mxu0
        %v2152 = vadd.f32 %v2063, %v2151
        %v2153 = vpop.f32.mrf.mxu0
        %v2154 = vadd.f32 %v2065, %v2153
        %2155 = vmatmul.bf16.gmra.mxu0 %v927
        %v2156 = vpop.f32.mrf.mxu0
        %v2157 = vadd.f32 %v2068, %v2156
        %v2158 = vpop.f32.mrf.mxu0
        %v2159 = vadd.f32 %v2070, %v2158
        %2160 = vmatmul.bf16.gmra.mxu0 %v935
        %v2161 = vpop.f32.mrf.mxu0
        %v2162 = vadd.f32 %v2073, %v2161
        %v2163 = vpop.f32.mrf.mxu0
        %v2164 = vadd.f32 %v2075, %v2163
        %2165 = vmatmul.bf16.gmra.mxu0 %v943
        %v2166 = vpop.f32.mrf.mxu0
        %v2167 = vadd.f32 %v2078, %v2166
        %v2168 = vpop.f32.mrf.mxu0
        %v2169 = vadd.f32 %v2080, %v2168
        %2170 = vmatmul.bf16.gmra.mxu0 %v951
        %v2171 = vpop.f32.mrf.mxu0
        %v2172 = vadd.f32 %v2083, %v2171
        %v2173 = vpop.f32.mrf.mxu0
        %v2174 = vadd.f32 %v2085, %v2173
        %2175 = vdwg.mxu0
        %v2176 = vpack.c.bf16 %v2097, %v2097
        %v2177 = vpack.c.bf16 %v2099, %v2099
        %v2178 = vpack.c.bf16 %v2102, %v2102
        %v2179 = vpack.c.bf16 %v2104, %v2104
        %v2180 = vpack.c.bf16 %v2107, %v2107
        %v2181 = vpack.c.bf16 %v2109, %v2109
        %v2182 = vpack.c.bf16 %v2112, %v2112
        %v2183 = vpack.c.bf16 %v2114, %v2114
        %v2184 = vpack.c.bf16 %v2117, %v2117
        %v2185 = vpack.c.bf16 %v2119, %v2119
        %v2186 = vpack.c.bf16 %v2122, %v2122
        %v2187 = vpack.c.bf16 %v2124, %v2124
        %v2188 = vpack.c.bf16 %v2127, %v2127
        %v2189 = vpack.c.bf16 %v2129, %v2129
        %v2190 = vpack.c.bf16 %v2132, %v2132
        %v2191 = vpack.c.bf16 %v2134, %v2134
        %v2192 = vpack.c.bf16 %v2137, %v2137
        %v2193 = vpack.c.bf16 %v2139, %v2139
        %v2194 = vpack.c.bf16 %v2142, %v2142
        %v2195 = vpack.c.bf16 %v2144, %v2144
        %v2196 = vpack.c.bf16 %v2147, %v2147
        %v2197 = vpack.c.bf16 %v2149, %v2149
        %v2198 = vpack.c.bf16 %v2152, %v2152
        %v2199 = vpack.c.bf16 %v2154, %v2154
        %v2200 = vpack.c.bf16 %v2157, %v2157
        %v2201 = vpack.c.bf16 %v2159, %v2159
        %v2202 = vpack.c.bf16 %v2162, %v2162
        %v2203 = vpack.c.bf16 %v2164, %v2164
        %v2204 = vpack.c.bf16 %v2167, %v2167
        %v2205 = vpack.c.bf16 %v2169, %v2169
        %v2206 = vpack.c.bf16 %v2172, %v2172
        %v2207 = vpack.c.bf16 %v2174, %v2174
        %2208 = vst [vmem:[%s181] sm:$0xf] %v2176
        %2209 = vst [vmem:[%s181 + $0x4] sm:$0xf] %v2177
        %2210 = vst [vmem:[%s181 + $0x8] sm:$0xf] %v2178
        %2211 = vst [vmem:[%s181 + $0xc] sm:$0xf] %v2179
        %2212 = vst [vmem:[%s181 + $0x10] sm:$0xf] %v2180
        %2213 = vst [vmem:[%s181 + $0x14] sm:$0xf] %v2181
        %2214 = vst [vmem:[%s181 + $0x18] sm:$0xf] %v2182
        %2215 = vst [vmem:[%s181 + $0x1c] sm:$0xf] %v2183
        %2216 = vst [vmem:[%s181 + $0x20] sm:$0xf] %v2184
        %2217 = vst [vmem:[%s181 + $0x24] sm:$0xf] %v2185
        %2218 = vst [vmem:[%s181 + $0x28] sm:$0xf] %v2186
        %2219 = vst [vmem:[%s181 + $0x2c] sm:$0xf] %v2187
        %2220 = vst [vmem:[%s181 + $0x30] sm:$0xf] %v2188
        %2221 = vst [vmem:[%s181 + $0x34] sm:$0xf] %v2189
        %2222 = vst [vmem:[%s181 + $0x38] sm:$0xf] %v2190
        %2223 = vst [vmem:[%s181 + $0x3c] sm:$0xf] %v2191
        %2224 = vst [vmem:[%s181 + $0x40] sm:$0xf] %v2192
        %2225 = vst [vmem:[%s181 + $0x44] sm:$0xf] %v2193
        %2226 = vst [vmem:[%s181 + $0x48] sm:$0xf] %v2194
        %2227 = vst [vmem:[%s181 + $0x4c] sm:$0xf] %v2195
        %2228 = vst [vmem:[%s181 + $0x50] sm:$0xf] %v2196
        %2229 = vst [vmem:[%s181 + $0x54] sm:$0xf] %v2197
        %2230 = vst [vmem:[%s181 + $0x58] sm:$0xf] %v2198
        %2231 = vst [vmem:[%s181 + $0x5c] sm:$0xf] %v2199
        %2232 = vst [vmem:[%s181 + $0x60] sm:$0xf] %v2200
        %2233 = vst [vmem:[%s181 + $0x64] sm:$0xf] %v2201
        %2234 = vst [vmem:[%s181 + $0x68] sm:$0xf] %v2202
        %2235 = vst [vmem:[%s181 + $0x6c] sm:$0xf] %v2203
        %2236 = vst [vmem:[%s181 + $0x70] sm:$0xf] %v2204
        %2237 = vst [vmem:[%s181 + $0x74] sm:$0xf] %v2205
        %2238 = vst [vmem:[%s181 + $0x78] sm:$0xf] %v2206
        %2239 = vst [vmem:[%s181 + $0x7c] sm:$0xf] %v2207
        %s2240 = sand.u32 %s75, 1
        %s2241 = scalar_lea.sflag [#allocation4], %s2240
        %s2242 = sand.u32 %s75, 1
        %s2243 = smul.addr %s2242, 128
        %s2244 = scalar_lea.vmem [#allocation7], %s2243
        // Predicated region
        $region37: #{tpu_custom_call.1} parent=27 // pred_check
          %p2245 = pneg %p85
        $region38: #{tpu_custom_call.1} parent=27 // pred_check_branch
          %2247 = sbr.rel (%p2245) target = $region40
        $region39: #{tpu_custom_call.1} parent=27 // pred_region
          %s2248 = smul.u32 32, %s20
          %2250 = vsyncadd %s2241, 0
          %s2251 = smul.addr %s2248, 4
          %s2252 = scalar_lea.hbm %s2, %s2251
          %s2253 = sshll.u32 %s2244, 4
          %s2254 = int_to_ptr.vmem [resolvable:$true] %s2253
          %s2255 = sshll.u32 %s2252, 4
          %s2256 = int_to_ptr.hbm [resolvable:$true] %s2255
          %2261 = dma.vmem_to_hbm [thread:$0]  %s2254, 2048, %s2256, %s2241, 64, 64, 4
        $region40: #{tpu_custom_call.1} parent=27 // pred_fallthru
          _
      $region28: #{tpu_custom_call.1} parent=5 // pred_fallthru
        _
      %p2262 = scmp.le.s32.totalorder 2, %s15
      // Predicated region
      $region41: #{tpu_custom_call.1} parent=5 // pred_check
        %p2263 = pneg %p2262
      $region42: #{tpu_custom_call.1} parent=5 // pred_check_branch
        %2265 = sbr.rel (%p2263) target = $region44
      $region43: #{tpu_custom_call.1} parent=5 // pred_region
        %s2266 = ssub.s32 %s15, 2
        // Predicated region
        $region45: #{tpu_custom_call.1} parent=43 // pred_check
          %p2267 = pneg %p91
        $region46: #{tpu_custom_call.1} parent=43 // pred_check_branch
          %2269 = sbr.rel (%p2267) target = $region48
        $region47: #{tpu_custom_call.1} parent=43 // pred_region
          %s2270 = sand.u32 %s76, 1
          %s2271 = scalar_lea.sflag [#allocation4], %s2270
          %s2272 = sand.u32 %s76, 1
          %s2273 = smul.addr %s2272, 128
          %s2274 = scalar_lea.vmem [#allocation7], %s2273
          %2276 = dma.done %s2271, 2048
        $region48: #{tpu_custom_call.1} parent=43 // pred_fallthru
          _
      $region44: #{tpu_custom_call.1} parent=5 // pred_fallthru
        _
    $region6: #{tpu_custom_call.1} parent=1 // loop_footer
      %s19 = sadd.s32 1, %s15
    $region7: #{tpu_custom_call.1} parent=1 // loop_footer_branch
      %14 = sbr.rel target = $region3
    $region8: #{tpu_custom_call.1} parent=1 // loop_exit
      _
    %2277 = vsyncpa [#allocation3], 1
    %s2278 = scalar_lea.sflag [#allocation3], 1
    %2279 = vsyncpa %s2278, 1
    %2280 = vsyncpa [#allocation6], 1
    %2281 = vsyncpa [#allocation4], 1
    %s2282 = scalar_lea.sflag [#allocation4], 1
    %2283 = vsyncpa %s2282, 1

</llo_original>
